<compile_context>
chip_gen: v5e
topology: v5e:2x2
jax: 0.10.0
libtpu: 0.0.40
codegen_flags: <defaults>
</compile_context>

<pallas_src>
import math

import jax
import jax.numpy as jnp
from jax.experimental import pallas as pl
from jax.experimental.pallas import tpu as pltpu

STATE_DIM = 34        # nn.MultiheadAttention(34, 1) forces state_dim == 34
ACTION_DIM = 6
HIDDEN = 128

E_PAD = 128           # lane-dense padding of the 34-wide embed dim
A_PAD = 128           # lane-dense padding of the action logits / probs
V_PAD = 128           # lane-dense padding of the scalar critic value
NEG_MASK = -1e30      # bias for padded logit columns -> softmax prob exactly 0

MXU_DTYPE = jnp.bfloat16   # matmul-operand dtype (f32 accumulation everywhere)


def _act_kernel(state_ref,
                wqkv_ref, bqkv_ref,
                w1_ref, b1_ref, w2_ref, b2_ref, w3_ref, b3_ref,
                probs_ref, value_ref, attnw_ref):
    """One grid step processes TB batch elements; state block is (TB, L, E_PAD)."""
    tb, seq, ep = state_ref.shape
    rows = tb * seq

    x = state_ref[...]                                    # (TB, L, EP) f32
    xf = x.reshape(rows, ep)                              # (TB*L, EP)
    xf_mx = xf.astype(MXU_DTYPE)                          # hoisted: reused by critic

    # ---------------- attention: fused Q/K/V projection (one matmul) -------------
    # 1/sqrt(34) softmax scaling is pre-folded into the Q weights/bias.
    qkv = (jnp.dot(xf_mx, wqkv_ref[...], preferred_element_type=jnp.float32)
           + bqkv_ref[...])
    qkv = qkv.reshape(tb, seq, 3 * ep)
    q = qkv[:, :, 0 * ep:1 * ep]
    k = qkv[:, :, 1 * ep:2 * ep]
    v = qkv[:, :, 2 * ep:3 * ep]

    # single head, head_dim == 34 (zero-padded columns contribute exactly 0)
    scores = jnp.einsum('ble,bke->blk',
                        q.astype(MXU_DTYPE), k.astype(MXU_DTYPE),
                        preferred_element_type=jnp.float32)          # (TB, L, L)
    scores = scores - jnp.max(scores, axis=-1, keepdims=True)
    e = jnp.exp(scores)
    attn = e * pl.reciprocal(jnp.sum(e, axis=-1, keepdims=True), approx=True)
    ctx = jnp.einsum('blk,bke->ble',
                     attn.astype(MXU_DTYPE), v.astype(MXU_DTYPE),
                     preferred_element_type=jnp.float32)              # (TB, L, EP)
    ctx_mx = ctx.reshape(rows, ep).astype(MXU_DTYPE)

    # ---------------- actor MLP (attention out_proj folded into layer 1) ---------
    ha = jnp.tanh(jnp.dot(ctx_mx, w1_ref[:, :HIDDEN],
                          preferred_element_type=jnp.float32) + b1_ref[:, :HIDDEN])
    ha = jnp.tanh(jnp.dot(ha.astype(MXU_DTYPE), w2_ref[:, :HIDDEN],
                          preferred_element_type=jnp.float32) + b2_ref[:, :HIDDEN])
    logits = (jnp.dot(ha.astype(MXU_DTYPE), w3_ref[:, :A_PAD],
                      preferred_element_type=jnp.float32) + b3_ref[:, :A_PAD])
    # padded logit columns carry a -1e30 bias -> exp underflows to exactly 0
    logits = logits - jnp.max(logits, axis=-1, keepdims=True)
    pe = jnp.exp(logits)
    probs = pe * pl.reciprocal(jnp.sum(pe, axis=-1, keepdims=True), approx=True)

    # ---------------- critic MLP on the raw (padded) state ------------------------
    hc = jnp.tanh(jnp.dot(xf_mx, w1_ref[:, HIDDEN:],
                          preferred_element_type=jnp.float32) + b1_ref[:, HIDDEN:])
    hc = jnp.tanh(jnp.dot(hc.astype(MXU_DTYPE), w2_ref[:, HIDDEN:],
                          preferred_element_type=jnp.float32) + b2_ref[:, HIDDEN:])
    val = (jnp.dot(hc.astype(MXU_DTYPE), w3_ref[:, A_PAD:],
                   preferred_element_type=jnp.float32) + b3_ref[:, A_PAD:])

    # ---------------- lane-dense (128-wide) output stores -------------------------
    probs_ref[...] = probs.reshape(tb, seq, A_PAD)    # cols >= ACTION_DIM are 0
    value_ref[...] = val.reshape(tb, seq, V_PAD)      # col 0 is the value, rest 0
    attnw_ref[...] = attn                             # (TB, L, L); tiny side output


_PACKED_ORDER = ("wqkv", "bqkv", "w1", "b1", "w2", "b2", "w3", "b3")


def _const_index_map(ndim):
    zeros = (0,) * ndim
    return lambda b: zeros


def actor_critic_act_pallas(state_bf, packed, *, target_rows=256):
    """state_bf: (N, L, 34) float32. Returns (probs, values, attn_weights)."""
    N, L, E = state_bf.shape
    assert E == STATE_DIM

    # lane-pad the feature dim (zero columns are a mathematical no-op)
    x = jnp.pad(state_bf, ((0, 0), (0, 0), (0, E_PAD - E)))

    # Batch tile: aim for ~target_rows rows of MXU work per grid step, but keep
    # the grid >= 2 blocks when possible so v7x's two TensorCores both get work.
    tb = max(1, min(max(target_rows // L, 1), pl.cdiv(N, 2)))
    n_blocks = pl.cdiv(N, tb)
    n_pad = n_blocks * tb
    if n_pad != N:
        x = jnp.pad(x, ((0, n_pad - N), (0, 0), (0, 0)))    # zero-state tail rows

    in_specs = [pl.BlockSpec((tb, L, E_PAD), lambda b: (b, 0, 0))]
    in_specs += [pl.BlockSpec(packed[name].shape,
                              _const_index_map(packed[name].ndim))
                 for name in _PACKED_ORDER]

    out_shape = (jax.ShapeDtypeStruct((n_pad, L, A_PAD), jnp.float32),
                 jax.ShapeDtypeStruct((n_pad, L, V_PAD), jnp.float32),
                 jax.ShapeDtypeStruct((n_pad, L, L), jnp.float32))
    out_specs = (pl.BlockSpec((tb, L, A_PAD), lambda b: (b, 0, 0)),
                 pl.BlockSpec((tb, L, V_PAD), lambda b: (b, 0, 0)),
                 pl.BlockSpec((tb, L, L), lambda b: (b, 0, 0)))

    probs_pad, val_pad, attn_w = pl.pallas_call(
        _act_kernel,
        out_shape=out_shape,
        grid_spec=pltpu.PrefetchScalarGridSpec(
            num_scalar_prefetch=0,
            grid=(n_blocks,),
            in_specs=in_specs,
            out_specs=out_specs,
        ),
        compiler_params=pltpu.CompilerParams(
            dimension_semantics=("parallel",)),
        # Working set per block (~0.3 MiB bf16 weights + <1 MiB activations)
        # fits the default scoped-VMEM limit on v5e/v6e/v7x; no override needed.
    )(x, *[packed[name] for name in _PACKED_ORDER])

    probs = probs_pad[:N, :, :ACTION_DIM]
    values = val_pad[:N, :, :1]
    return probs, values, attn_w[:N]


def init_params(key):
    """Deterministic synthetic init matching the PyTorch module's parameter shapes.
    Linear weights are stored pre-transposed as (in, out): y = x @ W + b."""
    ks = jax.random.split(key, 10)

    def lin(k, fan_in, fan_out):
        bound = 1.0 / math.sqrt(fan_in)
        kw, kb = jax.random.split(k)
        w = jax.random.uniform(kw, (fan_in, fan_out), jnp.float32, -bound, bound)
        b = jax.random.uniform(kb, (1, fan_out), jnp.float32, -bound, bound)
        return w, b

    E, H, A = STATE_DIM, HIDDEN, ACTION_DIM
    p = {}
    p["wq"], p["bq"] = lin(ks[0], E, E)    # MultiheadAttention in_proj + out_proj
    p["wk"], p["bk"] = lin(ks[1], E, E)
    p["wv"], p["bv"] = lin(ks[2], E, E)
    p["wo"], p["bo"] = lin(ks[3], E, E)
    p["aw1"], p["ab1"] = lin(ks[4], E, H)  # actor
    p["aw2"], p["ab2"] = lin(ks[5], H, H)
    p["aw3"], p["ab3"] = lin(ks[6], H, A)
    p["cw1"], p["cb1"] = lin(ks[7], E, H)  # critic
    p["cw2"], p["cb2"] = lin(ks[8], H, H)
    p["cw3"], p["cb3"] = lin(ks[9], H, 1)
    return p


def pack_params(p):
    """Zero-pad to lane-dense widths, fold the attention scale into Q and the
    attention out_proj into the actor's first layer, and pack the 20 tensors
    into 8 kernel inputs."""
    def pad2(w, rows, cols):
        return jnp.pad(w, ((0, rows - w.shape[0]), (0, cols - w.shape[1])))

    E, H, A = STATE_DIM, HIDDEN, ACTION_DIM
    scale = 1.0 / math.sqrt(float(E))

    # fused Q/K/V with 1/sqrt(head_dim) folded into Q (exact)
    wqkv = jnp.concatenate(
        [pad2(p["wq"] * scale, E_PAD, E_PAD),
         pad2(p["wk"], E_PAD, E_PAD),
         pad2(p["wv"], E_PAD, E_PAD)], axis=1).astype(MXU_DTYPE)       # (128, 384)
    bqkv = jnp.concatenate(
        [pad2(p["bq"] * scale, 1, E_PAD),
         pad2(p["bk"], 1, E_PAD),
         pad2(p["bv"], 1, E_PAD)], axis=1)                             # (1, 384) f32

    # attention out_proj composed with actor layer 1 (exact: (x Wo + bo) Wa1 + ba1)
    aw1_f = p["wo"] @ p["aw1"]                                         # (34, 128)
    ab1_f = p["bo"] @ p["aw1"] + p["ab1"]                              # (1, 128)

    w1 = jnp.concatenate([pad2(aw1_f, E_PAD, H), pad2(p["cw1"], E_PAD, H)],
                         axis=1).astype(MXU_DTYPE)                     # (128, 256)
    b1 = jnp.concatenate([ab1_f, p["cb1"]], axis=1)                    # (1, 256)
    w2 = jnp.concatenate([p["aw2"], p["cw2"]], axis=1).astype(MXU_DTYPE)
    b2 = jnp.concatenate([p["ab2"], p["cb2"]], axis=1)

    w3 = jnp.concatenate([pad2(p["aw3"], H, A_PAD), pad2(p["cw3"], H, V_PAD)],
                         axis=1).astype(MXU_DTYPE)                     # (128, 256)
    ab3 = jnp.concatenate(
        [p["ab3"], jnp.full((1, A_PAD - A), NEG_MASK, jnp.float32)], axis=1)
    cb3 = pad2(p["cb3"], 1, V_PAD)
    b3 = jnp.concatenate([ab3, cb3], axis=1)                           # (1, 256)

    return {"wqkv": wqkv, "bqkv": bqkv, "w1": w1, "b1": b1,
            "w2": w2, "b2": b2, "w3": w3, "b3": b3}


def act(state_lne, packed, rng):
    """Mirror of ActorCritic.act(state) with seq-first state of shape (L, N, 34)."""
    state_bf = jnp.transpose(state_lne, (1, 0, 2))                     # (N, L, E)
    probs, values, _ = actor_critic_act_pallas(state_bf, packed)
    # TODO(synk): Categorical sampling / log_prob gather stays in plain JAX glue.
    logp = jnp.log(probs)
    action = jax.random.categorical(rng, logp, axis=-1)                # (N, L)
    action_logprob = jnp.take_along_axis(logp, action[..., None], axis=-1)[..., 0]
    # back to PyTorch's seq-first convention: action (L, N), logprob (L, N),
    # state_val (L, N, 1).
    return (jnp.transpose(action, (1, 0)),
            jnp.transpose(action_logprob, (1, 0)),
            jnp.transpose(values, (1, 0, 2)))


def _reference_forward(state_bf, p):
    """Pure-JAX f32 reference of attention + actor + critic (same math/params)."""
    x = state_bf
    q = x @ p["wq"] + p["bq"]
    k = x @ p["wk"] + p["bk"]
    v = x @ p["wv"] + p["bv"]
    scores = jnp.einsum('ble,bke->blk', q, k) / math.sqrt(STATE_DIM)
    attn = jax.nn.softmax(scores, axis=-1)
    ctx = jnp.einsum('blk,bke->ble', attn, v)
    a_out = ctx @ p["wo"] + p["bo"]
    h = jnp.tanh(a_out @ p["aw1"] + p["ab1"])
    h = jnp.tanh(h @ p["aw2"] + p["ab2"])
    probs = jax.nn.softmax(h @ p["aw3"] + p["ab3"], axis=-1)
    hc = jnp.tanh(x @ p["cw1"] + p["cb1"])
    hc = jnp.tanh(hc @ p["cw2"] + p["cb2"])
    val = hc @ p["cw3"] + p["cb3"]
    return probs, val, attn


if __name__ == "__main__":
    key = jax.random.PRNGKey(0)
    k_params, k_state, k_sample = jax.random.split(key, 3)

    params = init_params(k_params)
    packed = pack_params(params)

    L, N = 8, 16                               # (seq, batch), embed = state_dim = 34
    state = jax.random.normal(k_state, (L, N, STATE_DIM), dtype=jnp.float32)

    action, action_logprob, state_val = act(state, packed, k_sample)
    jax.block_until_ready((action, action_logprob, state_val))

    assert action.shape == (L, N)
    assert action_logprob.shape == (L, N)
    assert state_val.shape == (L, N, 1)

    # Numerical check against a pure-JAX f32 reference; the loose tolerance covers
    # the bf16 matmul operands, the approximate reciprocal, and the (exact-in-math)
    # weight compositions done at pack time.
    state_bf = jnp.transpose(state, (1, 0, 2))
    probs_k, values_k, attn_k = actor_critic_act_pallas(state_bf, packed)
    probs_r, values_r, attn_r = _reference_forward(state_bf, params)
    assert float(jnp.max(jnp.abs(probs_k - probs_r))) < 5e-2
    assert float(jnp.max(jnp.abs(values_k - values_r))) < 5e-2
    assert float(jnp.max(jnp.abs(attn_k - attn_r))) < 5e-2

    print("KERNEL_OK")
</pallas_src>

<mosaic_0001>
module attributes {stable_mosaic.version = 11 : i64} {
  func.func @_act_kernel(%arg0: i32, %arg1: memref<8x8x128xf32, #tpu.memory_space<vmem>>, %arg2: memref<128x384xbf16, #tpu.memory_space<vmem>>, %arg3: memref<1x384xf32, #tpu.memory_space<vmem>>, %arg4: memref<128x256xbf16, #tpu.memory_space<vmem>>, %arg5: memref<1x256xf32, #tpu.memory_space<vmem>>, %arg6: memref<128x256xbf16, #tpu.memory_space<vmem>>, %arg7: memref<1x256xf32, #tpu.memory_space<vmem>>, %arg8: memref<128x256xbf16, #tpu.memory_space<vmem>>, %arg9: memref<1x256xf32, #tpu.memory_space<vmem>>, %arg10: memref<8x8x128xf32, #tpu.memory_space<vmem>>, %arg11: memref<8x8x128xf32, #tpu.memory_space<vmem>>, %arg12: memref<8x8x8xf32, #tpu.memory_space<vmem>>) attributes {dimension_semantics = [#tpu.dimension_semantics<parallel>], iteration_bounds = array<i64: 2>, scalar_prefetch = 0 : i64, scratch_operands = 0 : i64, tpu.core_type = #tpu.core_type<tc>, window_params = [{transform_indices = @transform_0, window_bounds = array<i64: 8, 8, 128>}, {pipeline_mode = #tpu.pipeline_mode<synchronous>, transform_indices = @transform_1, window_bounds = array<i64: 128, 384>}, {pipeline_mode = #tpu.pipeline_mode<synchronous>, transform_indices = @transform_2, window_bounds = array<i64: 1, 384>}, {pipeline_mode = #tpu.pipeline_mode<synchronous>, transform_indices = @transform_3, window_bounds = array<i64: 128, 256>}, {pipeline_mode = #tpu.pipeline_mode<synchronous>, transform_indices = @transform_4, window_bounds = array<i64: 1, 256>}, {pipeline_mode = #tpu.pipeline_mode<synchronous>, transform_indices = @transform_5, window_bounds = array<i64: 128, 256>}, {pipeline_mode = #tpu.pipeline_mode<synchronous>, transform_indices = @transform_6, window_bounds = array<i64: 1, 256>}, {pipeline_mode = #tpu.pipeline_mode<synchronous>, transform_indices = @transform_7, window_bounds = array<i64: 128, 256>}, {pipeline_mode = #tpu.pipeline_mode<synchronous>, transform_indices = @transform_8, window_bounds = array<i64: 1, 256>}, {transform_indices = @transform_9, window_bounds = array<i64: 8, 8, 128>}, {transform_indices = @transform_10, window_bounds = array<i64: 8, 8, 128>}, {transform_indices = @transform_11, window_bounds = array<i64: 8, 8, 8>}]} {
    %c0 = arith.constant 0 : index
    %c0_0 = arith.constant 0 : index
    %c0_1 = arith.constant 0 : index
    %0 = vector.load %arg1[%c0, %c0_0, %c0_1] : memref<8x8x128xf32, #tpu.memory_space<vmem>>, vector<8x8x128xf32>
    %1 = vector.shape_cast %0 : vector<8x8x128xf32> to vector<64x128xf32>
    %2 = arith.truncf %1 : vector<64x128xf32> to vector<64x128xbf16>
    %c0_2 = arith.constant 0 : index
    %c0_3 = arith.constant 0 : index
    %3 = vector.load %arg2[%c0_2, %c0_3] : memref<128x384xbf16, #tpu.memory_space<vmem>>, vector<128x384xbf16>
    %cst = arith.constant dense<0.000000e+00> : vector<64x384xf32>
    %4 = tpu.matmul %2, %3, %cst {dimension_numbers = #tpu.dot_dimension_numbers<[1], [0], [0], [1], [0, 0, 1, 1], [], []>} : vector<64x128xbf16>, vector<128x384xbf16>, vector<64x384xf32> -> vector<64x384xf32>
    %c0_4 = arith.constant 0 : index
    %c0_5 = arith.constant 0 : index
    %5 = vector.load %arg3[%c0_4, %c0_5] : memref<1x384xf32, #tpu.memory_space<vmem>>, vector<1x384xf32>
    %6 = vector.broadcast %5 : vector<1x384xf32> to vector<64x384xf32>
    %7 = arith.addf %4, %6 : vector<64x384xf32>
    %8 = vector.shape_cast %7 : vector<64x384xf32> to vector<8x8x384xf32>
    %9 = vector.extract_strided_slice %8 {offsets = [0, 0, 0], sizes = [8, 8, 128], strides = [1, 1, 1]} : vector<8x8x384xf32> to vector<8x8x128xf32>
    %10 = vector.extract_strided_slice %8 {offsets = [0, 0, 128], sizes = [8, 8, 128], strides = [1, 1, 1]} : vector<8x8x384xf32> to vector<8x8x128xf32>
    %11 = vector.extract_strided_slice %8 {offsets = [0, 0, 256], sizes = [8, 8, 128], strides = [1, 1, 1]} : vector<8x8x384xf32> to vector<8x8x128xf32>
    %12 = arith.truncf %9 : vector<8x8x128xf32> to vector<8x8x128xbf16>
    %13 = arith.truncf %10 : vector<8x8x128xf32> to vector<8x8x128xbf16>
    "tpu.trace_start"() <{level = 10 : i32, message = "ble,bke->blk"}> : () -> ()
    %cst_6 = arith.constant dense<0.000000e+00> : vector<8x8x8xf32>
    %14 = tpu.matmul %12, %13, %cst_6 {dimension_numbers = #tpu.dot_dimension_numbers<[2], [2], [1], [1], [0, 0, 0, 1, 1, 1], [0], [0]>} : vector<8x8x128xbf16>, vector<8x8x128xbf16>, vector<8x8x8xf32> -> vector<8x8x8xf32>
    "tpu.trace_stop"() : () -> ()
    %cst_7 = arith.constant dense<0xFF800000> : vector<8x8xf32>
    %15 = vector.multi_reduction <maximumf>, %14, %cst_7 [2] : vector<8x8x8xf32> to vector<8x8xf32>
    %16 = vector.shape_cast %15 : vector<8x8xf32> to vector<8x8x1xf32>
    %17 = vector.broadcast %16 : vector<8x8x1xf32> to vector<8x8x8xf32>
    %18 = arith.subf %14, %17 : vector<8x8x8xf32>
    %19 = math.exp %18 : vector<8x8x8xf32>
    %cst_8 = arith.constant dense<0.000000e+00> : vector<8x8xf32>
    %20 = vector.multi_reduction <add>, %19, %cst_8 [2] : vector<8x8x8xf32> to vector<8x8xf32>
    %21 = vector.shape_cast %20 : vector<8x8xf32> to vector<8x8x1xf32>
    %22 = tpu.reciprocal %21 {approx = true} : vector<8x8x1xf32> -> vector<8x8x1xf32>
    %23 = vector.broadcast %22 : vector<8x8x1xf32> to vector<8x8x8xf32>
    %24 = arith.mulf %19, %23 : vector<8x8x8xf32>
    %25 = arith.truncf %24 : vector<8x8x8xf32> to vector<8x8x8xbf16>
    %26 = arith.truncf %11 : vector<8x8x128xf32> to vector<8x8x128xbf16>
    "tpu.trace_start"() <{level = 10 : i32, message = "blk,bke->ble"}> : () -> ()
    %cst_9 = arith.constant dense<0.000000e+00> : vector<8x8x128xf32>
    %27 = tpu.matmul %25, %26, %cst_9 {dimension_numbers = #tpu.dot_dimension_numbers<[2], [1], [1], [2], [0, 0, 0, 1, 1, 2], [0], [0]>} : vector<8x8x8xbf16>, vector<8x8x128xbf16>, vector<8x8x128xf32> -> vector<8x8x128xf32>
    "tpu.trace_stop"() : () -> ()
    %28 = vector.shape_cast %27 : vector<8x8x128xf32> to vector<64x128xf32>
    %29 = arith.truncf %28 : vector<64x128xf32> to vector<64x128xbf16>
    %c0_10 = arith.constant 0 : index
    %c0_11 = arith.constant 0 : index
    %30 = vector.load %arg4[%c0_10, %c0_11] : memref<128x256xbf16, #tpu.memory_space<vmem>>, vector<128x128xbf16>
    %cst_12 = arith.constant dense<0.000000e+00> : vector<64x128xf32>
    %31 = tpu.matmul %29, %30, %cst_12 {dimension_numbers = #tpu.dot_dimension_numbers<[1], [0], [0], [1], [0, 0, 1, 1], [], []>} : vector<64x128xbf16>, vector<128x128xbf16>, vector<64x128xf32> -> vector<64x128xf32>
    %c0_13 = arith.constant 0 : index
    %c0_14 = arith.constant 0 : index
    %32 = vector.load %arg5[%c0_13, %c0_14] : memref<1x256xf32, #tpu.memory_space<vmem>>, vector<1x128xf32>
    %33 = vector.broadcast %32 : vector<1x128xf32> to vector<64x128xf32>
    %34 = arith.addf %31, %33 : vector<64x128xf32>
    %35 = math.tanh %34 : vector<64x128xf32>
    %36 = arith.truncf %35 : vector<64x128xf32> to vector<64x128xbf16>
    %c0_15 = arith.constant 0 : index
    %c0_16 = arith.constant 0 : index
    %37 = vector.load %arg6[%c0_15, %c0_16] : memref<128x256xbf16, #tpu.memory_space<vmem>>, vector<128x128xbf16>
    %cst_17 = arith.constant dense<0.000000e+00> : vector<64x128xf32>
    %38 = tpu.matmul %36, %37, %cst_17 {dimension_numbers = #tpu.dot_dimension_numbers<[1], [0], [0], [1], [0, 0, 1, 1], [], []>} : vector<64x128xbf16>, vector<128x128xbf16>, vector<64x128xf32> -> vector<64x128xf32>
    %c0_18 = arith.constant 0 : index
    %c0_19 = arith.constant 0 : index
    %39 = vector.load %arg7[%c0_18, %c0_19] : memref<1x256xf32, #tpu.memory_space<vmem>>, vector<1x128xf32>
    %40 = vector.broadcast %39 : vector<1x128xf32> to vector<64x128xf32>
    %41 = arith.addf %38, %40 : vector<64x128xf32>
    %42 = math.tanh %41 : vector<64x128xf32>
    %43 = arith.truncf %42 : vector<64x128xf32> to vector<64x128xbf16>
    %c0_20 = arith.constant 0 : index
    %c0_21 = arith.constant 0 : index
    %44 = vector.load %arg8[%c0_20, %c0_21] : memref<128x256xbf16, #tpu.memory_space<vmem>>, vector<128x128xbf16>
    %cst_22 = arith.constant dense<0.000000e+00> : vector<64x128xf32>
    %45 = tpu.matmul %43, %44, %cst_22 {dimension_numbers = #tpu.dot_dimension_numbers<[1], [0], [0], [1], [0, 0, 1, 1], [], []>} : vector<64x128xbf16>, vector<128x128xbf16>, vector<64x128xf32> -> vector<64x128xf32>
    %c0_23 = arith.constant 0 : index
    %c0_24 = arith.constant 0 : index
    %46 = vector.load %arg9[%c0_23, %c0_24] : memref<1x256xf32, #tpu.memory_space<vmem>>, vector<1x128xf32>
    %47 = vector.broadcast %46 : vector<1x128xf32> to vector<64x128xf32>
    %48 = arith.addf %45, %47 : vector<64x128xf32>
    %cst_25 = arith.constant dense<0xFF800000> : vector<64xf32>
    %49 = vector.multi_reduction <maximumf>, %48, %cst_25 [1] : vector<64x128xf32> to vector<64xf32>
    %50 = vector.shape_cast %49 : vector<64xf32> to vector<64x1xf32>
    %51 = vector.broadcast %50 : vector<64x1xf32> to vector<64x128xf32>
    %52 = arith.subf %48, %51 : vector<64x128xf32>
    %53 = math.exp %52 : vector<64x128xf32>
    %cst_26 = arith.constant dense<0.000000e+00> : vector<64xf32>
    %54 = vector.multi_reduction <add>, %53, %cst_26 [1] : vector<64x128xf32> to vector<64xf32>
    %55 = vector.shape_cast %54 : vector<64xf32> to vector<64x1xf32>
    %56 = tpu.reciprocal %55 {approx = true} : vector<64x1xf32> -> vector<64x1xf32>
    %57 = vector.broadcast %56 : vector<64x1xf32> to vector<64x128xf32>
    %58 = arith.mulf %53, %57 : vector<64x128xf32>
    %c0_27 = arith.constant 0 : index
    %c128 = arith.constant 128 : index
    %59 = vector.load %arg4[%c0_27, %c128] : memref<128x256xbf16, #tpu.memory_space<vmem>>, vector<128x128xbf16>
    %cst_28 = arith.constant dense<0.000000e+00> : vector<64x128xf32>
    %60 = tpu.matmul %2, %59, %cst_28 {dimension_numbers = #tpu.dot_dimension_numbers<[1], [0], [0], [1], [0, 0, 1, 1], [], []>} : vector<64x128xbf16>, vector<128x128xbf16>, vector<64x128xf32> -> vector<64x128xf32>
    %c0_29 = arith.constant 0 : index
    %c128_30 = arith.constant 128 : index
    %61 = vector.load %arg5[%c0_29, %c128_30] : memref<1x256xf32, #tpu.memory_space<vmem>>, vector<1x128xf32>
    %62 = vector.broadcast %61 : vector<1x128xf32> to vector<64x128xf32>
    %63 = arith.addf %60, %62 : vector<64x128xf32>
    %64 = math.tanh %63 : vector<64x128xf32>
    %65 = arith.truncf %64 : vector<64x128xf32> to vector<64x128xbf16>
    %c0_31 = arith.constant 0 : index
    %c128_32 = arith.constant 128 : index
    %66 = vector.load %arg6[%c0_31, %c128_32] : memref<128x256xbf16, #tpu.memory_space<vmem>>, vector<128x128xbf16>
    %cst_33 = arith.constant dense<0.000000e+00> : vector<64x128xf32>
    %67 = tpu.matmul %65, %66, %cst_33 {dimension_numbers = #tpu.dot_dimension_numbers<[1], [0], [0], [1], [0, 0, 1, 1], [], []>} : vector<64x128xbf16>, vector<128x128xbf16>, vector<64x128xf32> -> vector<64x128xf32>
    %c0_34 = arith.constant 0 : index
    %c128_35 = arith.constant 128 : index
    %68 = vector.load %arg7[%c0_34, %c128_35] : memref<1x256xf32, #tpu.memory_space<vmem>>, vector<1x128xf32>
    %69 = vector.broadcast %68 : vector<1x128xf32> to vector<64x128xf32>
    %70 = arith.addf %67, %69 : vector<64x128xf32>
    %71 = math.tanh %70 : vector<64x128xf32>
    %72 = arith.truncf %71 : vector<64x128xf32> to vector<64x128xbf16>
    %c0_36 = arith.constant 0 : index
    %c128_37 = arith.constant 128 : index
    %73 = vector.load %arg8[%c0_36, %c128_37] : memref<128x256xbf16, #tpu.memory_space<vmem>>, vector<128x128xbf16>
    %cst_38 = arith.constant dense<0.000000e+00> : vector<64x128xf32>
    %74 = tpu.matmul %72, %73, %cst_38 {dimension_numbers = #tpu.dot_dimension_numbers<[1], [0], [0], [1], [0, 0, 1, 1], [], []>} : vector<64x128xbf16>, vector<128x128xbf16>, vector<64x128xf32> -> vector<64x128xf32>
    %c0_39 = arith.constant 0 : index
    %c128_40 = arith.constant 128 : index
    %75 = vector.load %arg9[%c0_39, %c128_40] : memref<1x256xf32, #tpu.memory_space<vmem>>, vector<1x128xf32>
    %76 = vector.broadcast %75 : vector<1x128xf32> to vector<64x128xf32>
    %77 = arith.addf %74, %76 : vector<64x128xf32>
    %78 = vector.shape_cast %58 : vector<64x128xf32> to vector<8x8x128xf32>
    %c0_41 = arith.constant 0 : index
    %c0_42 = arith.constant 0 : index
    %c0_43 = arith.constant 0 : index
    %79 = vector.load %arg10[%c0_41, %c0_42, %c0_43] : memref<8x8x128xf32, #tpu.memory_space<vmem>>, vector<8x8x128xf32>
    tpu.vector_store %arg10[%c0_41, %c0_42, %c0_43], %78 {strides = array<i32>} : memref<8x8x128xf32, #tpu.memory_space<vmem>>, vector<8x8x128xf32>,
    %80 = vector.shape_cast %77 : vector<64x128xf32> to vector<8x8x128xf32>
    %c0_44 = arith.constant 0 : index
    %c0_45 = arith.constant 0 : index
    %c0_46 = arith.constant 0 : index
    %81 = vector.load %arg11[%c0_44, %c0_45, %c0_46] : memref<8x8x128xf32, #tpu.memory_space<vmem>>, vector<8x8x128xf32>
    tpu.vector_store %arg11[%c0_44, %c0_45, %c0_46], %80 {strides = array<i32>} : memref<8x8x128xf32, #tpu.memory_space<vmem>>, vector<8x8x128xf32>,
    %c0_47 = arith.constant 0 : index
    %c0_48 = arith.constant 0 : index
    %c0_49 = arith.constant 0 : index
    %82 = vector.load %arg12[%c0_47, %c0_48, %c0_49] : memref<8x8x8xf32, #tpu.memory_space<vmem>>, vector<8x8x8xf32>
    tpu.vector_store %arg12[%c0_47, %c0_48, %c0_49], %24 {strides = array<i32>} : memref<8x8x8xf32, #tpu.memory_space<vmem>>, vector<8x8x8xf32>,
    return
  }
  func.func @transform_0(%arg0: i32) -> (i32, i32, i32) {
    %c0_i32 = arith.constant 0 : i32
    %c0_i32_0 = arith.constant 0 : i32
    %c0_i32_1 = arith.constant 0 : i32
    return %arg0, %c0_i32, %c0_i32_0 : i32, i32, i32
  }
  func.func @transform_1(%arg0: i32) -> (i32, i32) {
    %c0_i32 = arith.constant 0 : i32
    %c0_i32_0 = arith.constant 0 : i32
    %c0_i32_1 = arith.constant 0 : i32
    return %c0_i32, %c0_i32_0 : i32, i32
  }
  func.func @transform_2(%arg0: i32) -> (i32, i32) {
    %c0_i32 = arith.constant 0 : i32
    %c0_i32_0 = arith.constant 0 : i32
    %c0_i32_1 = arith.constant 0 : i32
    return %c0_i32, %c0_i32_0 : i32, i32
  }
  func.func @transform_3(%arg0: i32) -> (i32, i32) {
    %c0_i32 = arith.constant 0 : i32
    %c0_i32_0 = arith.constant 0 : i32
    %c0_i32_1 = arith.constant 0 : i32
    return %c0_i32, %c0_i32_0 : i32, i32
  }
  func.func @transform_4(%arg0: i32) -> (i32, i32) {
    %c0_i32 = arith.constant 0 : i32
    %c0_i32_0 = arith.constant 0 : i32
    %c0_i32_1 = arith.constant 0 : i32
    return %c0_i32, %c0_i32_0 : i32, i32
  }
  func.func @transform_5(%arg0: i32) -> (i32, i32) {
    %c0_i32 = arith.constant 0 : i32
    %c0_i32_0 = arith.constant 0 : i32
    %c0_i32_1 = arith.constant 0 : i32
    return %c0_i32, %c0_i32_0 : i32, i32
  }
  func.func @transform_6(%arg0: i32) -> (i32, i32) {
    %c0_i32 = arith.constant 0 : i32
    %c0_i32_0 = arith.constant 0 : i32
    %c0_i32_1 = arith.constant 0 : i32
    return %c0_i32, %c0_i32_0 : i32, i32
  }
  func.func @transform_7(%arg0: i32) -> (i32, i32) {
    %c0_i32 = arith.constant 0 : i32
    %c0_i32_0 = arith.constant 0 : i32
    %c0_i32_1 = arith.constant 0 : i32
    return %c0_i32, %c0_i32_0 : i32, i32
  }
  func.func @transform_8(%arg0: i32) -> (i32, i32) {
    %c0_i32 = arith.constant 0 : i32
    %c0_i32_0 = arith.constant 0 : i32
    %c0_i32_1 = arith.constant 0 : i32
    return %c0_i32, %c0_i32_0 : i32, i32
  }
  func.func @transform_9(%arg0: i32) -> (i32, i32, i32) {
    %c0_i32 = arith.constant 0 : i32
    %c0_i32_0 = arith.constant 0 : i32
    %c0_i32_1 = arith.constant 0 : i32
    return %arg0, %c0_i32, %c0_i32_0 : i32, i32, i32
  }
  func.func @transform_10(%arg0: i32) -> (i32, i32, i32) {
    %c0_i32 = arith.constant 0 : i32
    %c0_i32_0 = arith.constant 0 : i32
    %c0_i32_1 = arith.constant 0 : i32
    return %arg0, %c0_i32, %c0_i32_0 : i32, i32, i32
  }
  func.func @transform_11(%arg0: i32) -> (i32, i32, i32) {
    %c0_i32 = arith.constant 0 : i32
    %c0_i32_0 = arith.constant 0 : i32
    %c0_i32_1 = arith.constant 0 : i32
    return %arg0, %c0_i32, %c0_i32_0 : i32, i32, i32
  }
}

</mosaic_0001>

<llo_original>
// kernel: tpu_custom_call.1
$region0: #{tpu_custom_call.1}
  #allocation0 [shape = 'u32[]', space=smem, size = 0x4, offset = 0x4, fixed_abs, tag = 'smem constant byte address 0x4 - core index']
  #allocation1 [shape = 'u32[72,128]{1,0:T(1,128)}', space=vmem, size = 0x9000, scoped, tag = 'internal scratch']
  %s0 = inlined_call_operand.hbm [shape: f32[16,8,128], index: 0, kind: input, shape index: {}]
  %s1 = inlined_call_operand.hbm [shape: bf16[128,384], index: 1, kind: input, shape index: {}]
  %s2 = inlined_call_operand.hbm [shape: f32[1,384], index: 2, kind: input, shape index: {}]
  %s3 = inlined_call_operand.hbm [shape: bf16[128,256], index: 3, kind: input, shape index: {}]
  %s4 = inlined_call_operand.vmem [shape: f32[1,256], index: 4, kind: input, shape index: {}]
  %s5 = inlined_call_operand.hbm [shape: bf16[128,256], index: 5, kind: input, shape index: {}]
  %s6 = inlined_call_operand.vmem [shape: f32[1,256], index: 6, kind: input, shape index: {}]
  %s7 = inlined_call_operand.hbm [shape: bf16[128,256], index: 7, kind: input, shape index: {}]
  %s8 = inlined_call_operand.vmem [shape: f32[1,256], index: 8, kind: input, shape index: {}]
  %s9 = inlined_call_operand.hbm [shape: f32[16,8,128], index: 9, kind: output, shape index: {0}]
  %s10 = inlined_call_operand.hbm [shape: f32[16,8,128], index: 10, kind: output, shape index: {1}]
  %s11 = inlined_call_operand.vmem [shape: f32[16,8,8], index: 11, kind: output, shape index: {2}]
  %12 = xla_tuple %s9, %s10, %s11
  %s13 = sld [smem:[#allocation0]]
  $region109: #{tpu_custom_call.1} parent=0
    _
  %s15 = ssub.s32 1, %s13
  %s16 = scalar_select 0, %s15, %s13
  $region1: #{tpu_custom_call.1} parent=0
    #allocation2 [shape = 'u8[65536]{0}', space=vmem, size = 0x10000, scoped, tag = 'input window, operand 0']
    #allocation3 [shape = 's32[2]{0}', space=sflag, size = 0x8, scoped, tag = 'scoped memory for tpu_custom_call.1']
    #allocation4 [shape = 's32[2]{0}', space=sflag, size = 0x8, scoped, tag = 'scoped memory for tpu_custom_call.1']
    #allocation5 [shape = 'u8[98304]{0}', space=vmem, size = 0x18000, scoped, tag = 'input window, operand 1, single buffered']
    #allocation6 [shape = 's32[1]{0}', space=sflag, size = 0x4, scoped, tag = 'scoped memory for tpu_custom_call.1']
    #allocation7 [shape = 'u8[1536]{0}', space=vmem, size = 0x800, scoped, tag = 'input window, operand 2, single buffered']
    #allocation8 [shape = 'u8[65536]{0}', space=vmem, size = 0x10000, scoped, tag = 'input window, operand 3, single buffered']
    #allocation9 [shape = 's32[1]{0}', space=sflag, size = 0x4, scoped, tag = 'scoped memory for tpu_custom_call.1']
    #allocation10 [shape = 'u8[65536]{0}', space=vmem, size = 0x10000, scoped, tag = 'input window, operand 5, single buffered']
    #allocation11 [shape = 'u8[65536]{0}', space=vmem, size = 0x10000, scoped, tag = 'input window, operand 7, single buffered']
    #allocation12 [shape = 's32[1]{0}', space=sflag, size = 0x4, scoped, tag = 'scoped memory for tpu_custom_call.1']
    #allocation13 [shape = 'u8[65536]{0}', space=vmem, size = 0x10000, scoped, tag = 'output window, operand 0']
    #allocation14 [shape = 'u8[65536]{0}', space=vmem, size = 0x10000, scoped, tag = 'output window, operand 1']
    #allocation15 [shape = 's32[2]{0}', space=sflag, size = 0x8, scoped, tag = 'scoped memory for tpu_custom_call.1']
    %17 = vsyncpa [#allocation3], 0
    %s18 = scalar_lea.sflag [#allocation3], 1
    %19 = vsyncpa %s18, 0
    %20 = vsyncpa [#allocation6], 0
    %21 = vsyncpa [#allocation9], 0
    %22 = vsyncpa [#allocation12], 0
    %23 = vsyncpa [#allocation4], 0
    %s24 = scalar_lea.sflag [#allocation4], 1
    %25 = vsyncpa %s24, 0
    %26 = vsyncpa [#allocation15], 0
    %s27 = scalar_lea.sflag [#allocation15], 1
    %28 = vsyncpa %s27, 0
    loop: start=0, step=1, limit=4
    $region2: #{tpu_custom_call.1} parent=1 // loop_pre_header
      _
    $region3: #{tpu_custom_call.1} parent=1 // loop_header
      %s30 = sphi 0, %s34
      %p31 = scmp.ge.s32.totalorder %s30, 4
      %s40 = sphi 0, %s42
      %s43 = sphi 0, %s40
      %s44 = sphi 0, %s43
      %s60 = sphi 0, %s44
      %s64 = sphi 0, %s64
      %s66 = sphi 0, %s64
      %s67 = sphi 0, %s66
      %s81 = sphi 0, %s67
      %s85 = sphi 0, %s85
      %s87 = sphi 0, %s85
      %s88 = sphi 0, %s87
      %s102 = sphi 0, %s88
      %s106 = sphi 0, %s106
      %s108 = sphi 0, %s106
      %s109 = sphi 0, %s108
      %s123 = sphi 0, %s109
      %s127 = sphi 0, %s127
      %s129 = sphi 0, %s127
      %s130 = sphi 0, %s129
      %s144 = sphi 0, %s130
      %s148 = sphi 0, %s148
      %s150 = sphi 0, %s148
      %s151 = sphi 0, %s150
      %s165 = sphi 0, %s151
      %s169 = sphi 0, %s169
      %s171 = sphi 0, %s169
      %s172 = sphi 0, %s171
      %s186 = sphi 0, %s172
      %s190 = sphi 0, %s190
      %s192 = sphi 0, %s190
      %s193 = sphi 0, %s192
      %s207 = sphi 0, %s193
      %s211 = sphi 0, %s211
      %s213 = sphi 0, %s211
      %s214 = sphi 0, %s213
      %s228 = sphi 0, %s214
      %s234 = sphi 0, %s236
      %s237 = sphi 0, %s234
      %s238 = sphi 0, %s237
      %s254 = sphi 0, %s238
      %s260 = sphi 0, %s262
      %s263 = sphi 0, %s260
      %s264 = sphi 0, %s263
      %s280 = sphi 0, %s264
      %s286 = sphi 0, %s288
      %s289 = sphi 0, %s286
      %s290 = sphi 0, %s289
      %s306 = sphi 0, %s290
    $region4: #{tpu_custom_call.1} parent=1 // loop_header_branch
      %33 = sbr.rel (%p31) target = $region8
    $region5: #{tpu_custom_call.1} parent=1 // loop_body
      %s35 = ssub.s32 %s30, 1
      %s36 = ssub.s32 %s30, 2
      %s37 = sadd.s32 %s30, 1
      %s38 = ssub.s32 %s30, %s37
      %p39 = scmp.eq.s32.totalorder %s38, 0
      %s41 = sadd.s32 %s40, 1
      %s42 = scalar_select %p39, %s40, %s41
      %p45 = pneg %p39
      %p46 = scmp.eq.s32.totalorder %s30, 1
      %p47 = por %p45, %p46
      %p48 = scmp.ne.s32.totalorder %s40, %s43
      %p49 = scmp.eq.s32.totalorder %s30, 0
      %p50 = por %p48, %p49
      %p51 = scmp.ne.s32.totalorder %s40, %s43
      %p52 = scmp.eq.s32.totalorder %s35, 1
      %p53 = por %p51, %p52
      %p54 = scmp.ne.s32.totalorder %s43, %s44
      %p55 = scmp.eq.s32.totalorder %s35, 0
      %p56 = por %p54, %p55
      %p57 = scmp.ne.s32.totalorder %s43, %s44
      %p58 = scmp.eq.s32.totalorder %s36, 1
      %p59 = por %p57, %p58
      %p61 = scmp.ne.s32.totalorder %s44, %s60
      %p62 = scmp.eq.s32.totalorder %s36, 0
      %p63 = por %p61, %p62
      %s65 = sadd.s32 %s64, 1
      %p68 = scmp.eq.s32.totalorder %s30, 1
      %p69 = scmp.ne.s32.totalorder %s64, %s66
      %p70 = scmp.eq.s32.totalorder %s30, 0
      %p71 = por %p69, %p70
      %p72 = scmp.ne.s32.totalorder %s64, %s66
      %p73 = scmp.eq.s32.totalorder %s35, 1
      %p74 = por %p72, %p73
      %p75 = scmp.ne.s32.totalorder %s66, %s67
      %p76 = scmp.eq.s32.totalorder %s35, 0
      %p77 = por %p75, %p76
      %p78 = scmp.ne.s32.totalorder %s66, %s67
      %p79 = scmp.eq.s32.totalorder %s36, 1
      %p80 = por %p78, %p79
      %p82 = scmp.ne.s32.totalorder %s67, %s81
      %p83 = scmp.eq.s32.totalorder %s36, 0
      %p84 = por %p82, %p83
      %s86 = sadd.s32 %s85, 1
      %p89 = scmp.eq.s32.totalorder %s30, 1
      %p90 = scmp.ne.s32.totalorder %s85, %s87
      %p91 = scmp.eq.s32.totalorder %s30, 0
      %p92 = por %p90, %p91
      %p93 = scmp.ne.s32.totalorder %s85, %s87
      %p94 = scmp.eq.s32.totalorder %s35, 1
      %p95 = por %p93, %p94
      %p96 = scmp.ne.s32.totalorder %s87, %s88
      %p97 = scmp.eq.s32.totalorder %s35, 0
      %p98 = por %p96, %p97
      %p99 = scmp.ne.s32.totalorder %s87, %s88
      %p100 = scmp.eq.s32.totalorder %s36, 1
      %p101 = por %p99, %p100
      %p103 = scmp.ne.s32.totalorder %s88, %s102
      %p104 = scmp.eq.s32.totalorder %s36, 0
      %p105 = por %p103, %p104
      %s107 = sadd.s32 %s106, 1
      %p110 = scmp.eq.s32.totalorder %s30, 1
      %p111 = scmp.ne.s32.totalorder %s106, %s108
      %p112 = scmp.eq.s32.totalorder %s30, 0
      %p113 = por %p111, %p112
      %p114 = scmp.ne.s32.totalorder %s106, %s108
      %p115 = scmp.eq.s32.totalorder %s35, 1
      %p116 = por %p114, %p115
      %p117 = scmp.ne.s32.totalorder %s108, %s109
      %p118 = scmp.eq.s32.totalorder %s35, 0
      %p119 = por %p117, %p118
      %p120 = scmp.ne.s32.totalorder %s108, %s109
      %p121 = scmp.eq.s32.totalorder %s36, 1
      %p122 = por %p120, %p121
      %p124 = scmp.ne.s32.totalorder %s109, %s123
      %p125 = scmp.eq.s32.totalorder %s36, 0
      %p126 = por %p124, %p125
      %s128 = sadd.s32 %s127, 1
      %p131 = scmp.eq.s32.totalorder %s30, 1
      %p132 = scmp.ne.s32.totalorder %s127, %s129
      %p133 = scmp.eq.s32.totalorder %s30, 0
      %p134 = por %p132, %p133
      %p135 = scmp.ne.s32.totalorder %s127, %s129
      %p136 = scmp.eq.s32.totalorder %s35, 1
      %p137 = por %p135, %p136
      %p138 = scmp.ne.s32.totalorder %s129, %s130
      %p139 = scmp.eq.s32.totalorder %s35, 0
      %p140 = por %p138, %p139
      %p141 = scmp.ne.s32.totalorder %s129, %s130
      %p142 = scmp.eq.s32.totalorder %s36, 1
      %p143 = por %p141, %p142
      %p145 = scmp.ne.s32.totalorder %s130, %s144
      %p146 = scmp.eq.s32.totalorder %s36, 0
      %p147 = por %p145, %p146
      %s149 = sadd.s32 %s148, 1
      %p152 = scmp.eq.s32.totalorder %s30, 1
      %p153 = scmp.ne.s32.totalorder %s148, %s150
      %p154 = scmp.eq.s32.totalorder %s30, 0
      %p155 = por %p153, %p154
      %p156 = scmp.ne.s32.totalorder %s148, %s150
      %p157 = scmp.eq.s32.totalorder %s35, 1
      %p158 = por %p156, %p157
      %p159 = scmp.ne.s32.totalorder %s150, %s151
      %p160 = scmp.eq.s32.totalorder %s35, 0
      %p161 = por %p159, %p160
      %p162 = scmp.ne.s32.totalorder %s150, %s151
      %p163 = scmp.eq.s32.totalorder %s36, 1
      %p164 = por %p162, %p163
      %p166 = scmp.ne.s32.totalorder %s151, %s165
      %p167 = scmp.eq.s32.totalorder %s36, 0
      %p168 = por %p166, %p167
      %s170 = sadd.s32 %s169, 1
      %p173 = scmp.eq.s32.totalorder %s30, 1
      %p174 = scmp.ne.s32.totalorder %s169, %s171
      %p175 = scmp.eq.s32.totalorder %s30, 0
      %p176 = por %p174, %p175
      %p177 = scmp.ne.s32.totalorder %s169, %s171
      %p178 = scmp.eq.s32.totalorder %s35, 1
      %p179 = por %p177, %p178
      %p180 = scmp.ne.s32.totalorder %s171, %s172
      %p181 = scmp.eq.s32.totalorder %s35, 0
      %p182 = por %p180, %p181
      %p183 = scmp.ne.s32.totalorder %s171, %s172
      %p184 = scmp.eq.s32.totalorder %s36, 1
      %p185 = por %p183, %p184
      %p187 = scmp.ne.s32.totalorder %s172, %s186
      %p188 = scmp.eq.s32.totalorder %s36, 0
      %p189 = por %p187, %p188
      %s191 = sadd.s32 %s190, 1
      %p194 = scmp.eq.s32.totalorder %s30, 1
      %p195 = scmp.ne.s32.totalorder %s190, %s192
      %p196 = scmp.eq.s32.totalorder %s30, 0
      %p197 = por %p195, %p196
      %p198 = scmp.ne.s32.totalorder %s190, %s192
      %p199 = scmp.eq.s32.totalorder %s35, 1
      %p200 = por %p198, %p199
      %p201 = scmp.ne.s32.totalorder %s192, %s193
      %p202 = scmp.eq.s32.totalorder %s35, 0
      %p203 = por %p201, %p202
      %p204 = scmp.ne.s32.totalorder %s192, %s193
      %p205 = scmp.eq.s32.totalorder %s36, 1
      %p206 = por %p204, %p205
      %p208 = scmp.ne.s32.totalorder %s193, %s207
      %p209 = scmp.eq.s32.totalorder %s36, 0
      %p210 = por %p208, %p209
      %s212 = sadd.s32 %s211, 1
      %p215 = scmp.eq.s32.totalorder %s30, 1
      %p216 = scmp.ne.s32.totalorder %s211, %s213
      %p217 = scmp.eq.s32.totalorder %s30, 0
      %p218 = por %p216, %p217
      %p219 = scmp.ne.s32.totalorder %s211, %s213
      %p220 = scmp.eq.s32.totalorder %s35, 1
      %p221 = por %p219, %p220
      %p222 = scmp.ne.s32.totalorder %s213, %s214
      %p223 = scmp.eq.s32.totalorder %s35, 0
      %p224 = por %p222, %p223
      %p225 = scmp.ne.s32.totalorder %s213, %s214
      %p226 = scmp.eq.s32.totalorder %s36, 1
      %p227 = por %p225, %p226
      %p229 = scmp.ne.s32.totalorder %s214, %s228
      %p230 = scmp.eq.s32.totalorder %s36, 0
      %p231 = por %p229, %p230
      %s232 = ssub.s32 %s30, %s37
      %p233 = scmp.eq.s32.totalorder %s232, 0
      %s235 = sadd.s32 %s234, 1
      %s236 = scalar_select %p233, %s234, %s235
      %p239 = pneg %p233
      %p240 = scmp.eq.s32.totalorder %s30, 1
      %p241 = por %p239, %p240
      %p242 = scmp.ne.s32.totalorder %s234, %s237
      %p243 = scmp.eq.s32.totalorder %s30, 0
      %p244 = por %p242, %p243
      %p245 = scmp.ne.s32.totalorder %s234, %s237
      %p246 = scmp.eq.s32.totalorder %s35, 1
      %p247 = por %p245, %p246
      %p248 = scmp.ne.s32.totalorder %s237, %s238
      %p249 = scmp.eq.s32.totalorder %s35, 0
      %p250 = por %p248, %p249
      %p251 = scmp.ne.s32.totalorder %s237, %s238
      %p252 = scmp.eq.s32.totalorder %s36, 1
      %p253 = por %p251, %p252
      %p255 = scmp.ne.s32.totalorder %s238, %s254
      %p256 = scmp.eq.s32.totalorder %s36, 0
      %p257 = por %p255, %p256
      %s258 = ssub.s32 %s30, %s37
      %p259 = scmp.eq.s32.totalorder %s258, 0
      %s261 = sadd.s32 %s260, 1
      %s262 = scalar_select %p259, %s260, %s261
      %p265 = pneg %p259
      %p266 = scmp.eq.s32.totalorder %s30, 1
      %p267 = por %p265, %p266
      %p268 = scmp.ne.s32.totalorder %s260, %s263
      %p269 = scmp.eq.s32.totalorder %s30, 0
      %p270 = por %p268, %p269
      %p271 = scmp.ne.s32.totalorder %s260, %s263
      %p272 = scmp.eq.s32.totalorder %s35, 1
      %p273 = por %p271, %p272
      %p274 = scmp.ne.s32.totalorder %s263, %s264
      %p275 = scmp.eq.s32.totalorder %s35, 0
      %p276 = por %p274, %p275
      %p277 = scmp.ne.s32.totalorder %s263, %s264
      %p278 = scmp.eq.s32.totalorder %s36, 1
      %p279 = por %p277, %p278
      %p281 = scmp.ne.s32.totalorder %s264, %s280
      %p282 = scmp.eq.s32.totalorder %s36, 0
      %p283 = por %p281, %p282
      %s284 = ssub.s32 %s30, %s37
      %p285 = scmp.eq.s32.totalorder %s284, 0
      %s287 = sadd.s32 %s286, 1
      %s288 = scalar_select %p285, %s286, %s287
      %p291 = pneg %p285
      %p292 = scmp.eq.s32.totalorder %s30, 1
      %p293 = por %p291, %p292
      %p294 = scmp.ne.s32.totalorder %s286, %s289
      %p295 = scmp.eq.s32.totalorder %s30, 0
      %p296 = por %p294, %p295
      %p297 = scmp.ne.s32.totalorder %s286, %s289
      %p298 = scmp.eq.s32.totalorder %s35, 1
      %p299 = por %p297, %p298
      %p300 = scmp.ne.s32.totalorder %s289, %s290
      %p301 = scmp.eq.s32.totalorder %s35, 0
      %p302 = por %p300, %p301
      %p303 = scmp.ne.s32.totalorder %s289, %s290
      %p304 = scmp.eq.s32.totalorder %s36, 1
      %p305 = por %p303, %p304
      %p307 = scmp.ne.s32.totalorder %s290, %s306
      %p308 = scmp.eq.s32.totalorder %s36, 0
      %p309 = por %p307, %p308
      %p310 = scmp.le.s32.totalorder 1, %s30
      %p311 = scmp.lt.s32.totalorder %s30, 3
      %p312 = pnand %p310, %p311
      %p313 = pneg %p312
      // Predicated region
      $region9: #{tpu_custom_call.1} parent=5 // pred_check
        _
      $region10: #{tpu_custom_call.1} parent=5 // pred_check_branch
        %315 = sbr.rel (%p312) target = $region12
      $region11: #{tpu_custom_call.1} parent=5 // pred_region
        %s316 = ssub.s32 %s30, 1
        // Predicated region
        $region13: #{tpu_custom_call.1} parent=11 // pred_check
          %p317 = pneg %p77
        $region14: #{tpu_custom_call.1} parent=11 // pred_check_branch
          %319 = sbr.rel (%p317) target = $region16
        $region15: #{tpu_custom_call.1} parent=11 // pred_region
          %321 = vsyncadd [#allocation6], 0
          %s322 = sshll.u32 %s1, 4
          %s323 = int_to_ptr.hbm [resolvable:$true] %s322
          %s324 = sshll.u32 [#allocation5], 4
          %s325 = int_to_ptr.vmem [resolvable:$true] %s324
          %330 = dma.hbm_to_vmem [thread:$0]  %s323, 3072, %s325, [#allocation6], 192, 192, 12
        $region16: #{tpu_custom_call.1} parent=11 // pred_fallthru
          _
        // Predicated region
        $region17: #{tpu_custom_call.1} parent=11 // pred_check
          %p331 = pneg %p98
        $region18: #{tpu_custom_call.1} parent=11 // pred_check_branch
          %333 = sbr.rel (%p331) target = $region20
        $region19: #{tpu_custom_call.1} parent=11 // pred_region
          %335 = vsyncadd [#allocation6], 0
          %s337 = sshll.u32 %s2, 4
          %s338 = int_to_ptr.hbm [resolvable:$true] %s337
          %s339 = sshll.u32 [#allocation7], 4
          %s340 = int_to_ptr.vmem [resolvable:$true] %s339
          %342 = dma.hbm_to_vmem [thread:$0]  %s338, 48, %s340, [#allocation6]
        $region20: #{tpu_custom_call.1} parent=11 // pred_fallthru
          _
        // Predicated region
        $region21: #{tpu_custom_call.1} parent=11 // pred_check
          %p343 = pneg %p119
        $region22: #{tpu_custom_call.1} parent=11 // pred_check_branch
          %345 = sbr.rel (%p343) target = $region24
        $region23: #{tpu_custom_call.1} parent=11 // pred_region
          %347 = vsyncadd [#allocation9], 0
          %s348 = sshll.u32 %s3, 4
          %s349 = int_to_ptr.hbm [resolvable:$true] %s348
          %s350 = sshll.u32 [#allocation8], 4
          %s351 = int_to_ptr.vmem [resolvable:$true] %s350
          %356 = dma.hbm_to_vmem [thread:$0]  %s349, 2048, %s351, [#allocation9], 128, 128, 8
        $region24: #{tpu_custom_call.1} parent=11 // pred_fallthru
          _
        // Predicated region
        $region25: #{tpu_custom_call.1} parent=11 // pred_check
          %p357 = pneg %p140
        $region26: #{tpu_custom_call.1} parent=11 // pred_check_branch
          %359 = sbr.rel (%p357) target = $region28
        $region27: #{tpu_custom_call.1} parent=11 // pred_region
          _
        $region28: #{tpu_custom_call.1} parent=11 // pred_fallthru
          _
        // Predicated region
        $region29: #{tpu_custom_call.1} parent=11 // pred_check
          %p360 = pneg %p161
        $region30: #{tpu_custom_call.1} parent=11 // pred_check_branch
          %362 = sbr.rel (%p360) target = $region32
        $region31: #{tpu_custom_call.1} parent=11 // pred_region
          %364 = vsyncadd [#allocation9], 0
          %s365 = sshll.u32 %s5, 4
          %s366 = int_to_ptr.hbm [resolvable:$true] %s365
          %s367 = sshll.u32 [#allocation10], 4
          %s368 = int_to_ptr.vmem [resolvable:$true] %s367
          %373 = dma.hbm_to_vmem [thread:$0]  %s366, 2048, %s368, [#allocation9], 128, 128, 8
        $region32: #{tpu_custom_call.1} parent=11 // pred_fallthru
          _
        // Predicated region
        $region33: #{tpu_custom_call.1} parent=11 // pred_check
          %p374 = pneg %p182
        $region34: #{tpu_custom_call.1} parent=11 // pred_check_branch
          %376 = sbr.rel (%p374) target = $region36
        $region35: #{tpu_custom_call.1} parent=11 // pred_region
          _
        $region36: #{tpu_custom_call.1} parent=11 // pred_fallthru
          _
        // Predicated region
        $region37: #{tpu_custom_call.1} parent=11 // pred_check
          %p377 = pneg %p203
        $region38: #{tpu_custom_call.1} parent=11 // pred_check_branch
          %379 = sbr.rel (%p377) target = $region40
        $region39: #{tpu_custom_call.1} parent=11 // pred_region
          %381 = vsyncadd [#allocation12], 0
          %s382 = sshll.u32 %s7, 4
          %s383 = int_to_ptr.hbm [resolvable:$true] %s382
          %s384 = sshll.u32 [#allocation11], 4
          %s385 = int_to_ptr.vmem [resolvable:$true] %s384
          %390 = dma.hbm_to_vmem [thread:$0]  %s383, 2048, %s385, [#allocation12], 128, 128, 8
        $region40: #{tpu_custom_call.1} parent=11 // pred_fallthru
          _
        // Predicated region
        $region41: #{tpu_custom_call.1} parent=11 // pred_check
          %p391 = pneg %p224
        $region42: #{tpu_custom_call.1} parent=11 // pred_check_branch
          %393 = sbr.rel (%p391) target = $region44
        $region43: #{tpu_custom_call.1} parent=11 // pred_region
          _
        $region44: #{tpu_custom_call.1} parent=11 // pred_fallthru
          _
      $region12: #{tpu_custom_call.1} parent=5 // pred_fallthru
        _
      %p394 = scmp.lt.s32.totalorder %s30, 2
      // Predicated region
      $region45: #{tpu_custom_call.1} parent=5 // pred_check
        %p395 = pneg %p394
      $region46: #{tpu_custom_call.1} parent=5 // pred_check_branch
        %397 = sbr.rel (%p395) target = $region48
      $region47: #{tpu_custom_call.1} parent=5 // pred_region
        // Predicated region
        $region49: #{tpu_custom_call.1} parent=47 // pred_check
          %p398 = pneg %p50
        $region50: #{tpu_custom_call.1} parent=47 // pred_check_branch
          %400 = sbr.rel (%p398) target = $region52
        $region51: #{tpu_custom_call.1} parent=47 // pred_region
          %s401 = sand.u32 %s40, 1
          %s402 = scalar_lea.sflag [#allocation3], %s401
          %s403 = sand.u32 %s40, 1
          %s404 = smul.addr %s403, 64
          %s405 = scalar_lea.vmem [#allocation2], %s404
          %s406 = smul.u32 8, %s30
          %408 = vsyncadd %s402, 0
          %s409 = smul.addr %s406, 8
          %s410 = scalar_lea.hbm %s0, %s409
          %s411 = sshll.u32 %s410, 4
          %s412 = int_to_ptr.hbm [resolvable:$true] %s411
          %s413 = sshll.u32 %s405, 4
          %s414 = int_to_ptr.vmem [resolvable:$true] %s413
          %419 = dma.hbm_to_vmem [thread:$0]  %s412, 1024, %s414, %s402, 128, 128, 8
        $region52: #{tpu_custom_call.1} parent=47 // pred_fallthru
          _
      $region48: #{tpu_custom_call.1} parent=5 // pred_fallthru
        _
      %p420 = scmp.le.s32.totalorder 1, %s30
      %p421 = scmp.lt.s32.totalorder %s30, 3
      %p422 = pnand %p420, %p421
      %p423 = pneg %p422
      // Predicated region
      $region53: #{tpu_custom_call.1} parent=5 // pred_check
        _
      $region54: #{tpu_custom_call.1} parent=5 // pred_check_branch
        %425 = sbr.rel (%p422) target = $region56
      $region55: #{tpu_custom_call.1} parent=5 // pred_region
        %s426 = ssub.s32 %s30, 1
        %s427 = sand.u32 %s43, 1
        %s428 = scalar_lea.sflag [#allocation3], %s427
        %s429 = sand.u32 %s43, 1
        %s430 = smul.addr %s429, 64
        %s431 = scalar_lea.vmem [#allocation2], %s430
        // Predicated region
        $region57: #{tpu_custom_call.1} parent=55 // pred_check
          %p432 = pneg %p56
        $region58: #{tpu_custom_call.1} parent=55 // pred_check_branch
          %434 = sbr.rel (%p432) target = $region60
        $region59: #{tpu_custom_call.1} parent=55 // pred_region
          %436 = dma.done %s428, 1024
        $region60: #{tpu_custom_call.1} parent=55 // pred_fallthru
          _
        // Predicated region
        $region61: #{tpu_custom_call.1} parent=55 // pred_check
          %p437 = pneg %p77
        $region62: #{tpu_custom_call.1} parent=55 // pred_check_branch
          %439 = sbr.rel (%p437) target = $region64
        $region63: #{tpu_custom_call.1} parent=55 // pred_region
          %441 = dma.done [#allocation6], 3072
        $region64: #{tpu_custom_call.1} parent=55 // pred_fallthru
          _
        // Predicated region
        $region65: #{tpu_custom_call.1} parent=55 // pred_check
          %p442 = pneg %p98
        $region66: #{tpu_custom_call.1} parent=55 // pred_check_branch
          %444 = sbr.rel (%p442) target = $region68
        $region67: #{tpu_custom_call.1} parent=55 // pred_region
          %446 = dma.done [#allocation6], 48
        $region68: #{tpu_custom_call.1} parent=55 // pred_fallthru
          _
        // Predicated region
        $region69: #{tpu_custom_call.1} parent=55 // pred_check
          %p447 = pneg %p119
        $region70: #{tpu_custom_call.1} parent=55 // pred_check_branch
          %449 = sbr.rel (%p447) target = $region72
        $region71: #{tpu_custom_call.1} parent=55 // pred_region
          %451 = dma.done [#allocation9], 2048
        $region72: #{tpu_custom_call.1} parent=55 // pred_fallthru
          _
        // Predicated region
        $region73: #{tpu_custom_call.1} parent=55 // pred_check
          %p452 = pneg %p161
        $region74: #{tpu_custom_call.1} parent=55 // pred_check_branch
          %454 = sbr.rel (%p452) target = $region76
        $region75: #{tpu_custom_call.1} parent=55 // pred_region
          %456 = dma.done [#allocation9], 2048
        $region76: #{tpu_custom_call.1} parent=55 // pred_fallthru
          _
        // Predicated region
        $region77: #{tpu_custom_call.1} parent=55 // pred_check
          %p457 = pneg %p203
        $region78: #{tpu_custom_call.1} parent=55 // pred_check_branch
          %459 = sbr.rel (%p457) target = $region80
        $region79: #{tpu_custom_call.1} parent=55 // pred_region
          %461 = dma.done [#allocation12], 2048
        $region80: #{tpu_custom_call.1} parent=55 // pred_fallthru
          _
        %s462 = sand.u32 %s43, 1
        %s463 = scalar_lea.sflag [#allocation3], %s462
        %s464 = sand.u32 %s43, 1
        %s465 = smul.addr %s464, 64
        %s466 = scalar_lea.vmem [#allocation2], %s465
        %p467 = pneg %p56
        %p468 = pneg %p53
        %p469 = pneg %p77
        %p470 = pneg %p74
        %p471 = pneg %p98
        %p472 = pneg %p95
        %p473 = pneg %p119
        %p474 = pneg %p116
        %p475 = pneg %p140
        %p476 = pneg %p137
        %p477 = pneg %p161
        %p478 = pneg %p158
        %p479 = pneg %p182
        %p480 = pneg %p179
        %p481 = pneg %p203
        %p482 = pneg %p200
        %p483 = pneg %p224
        %p484 = pneg %p221
        %p485 = pneg %p250
        %p486 = pneg %p247
        %s487 = sand.u32 %s237, 1
        %s488 = scalar_lea.sflag [#allocation4], %s487
        %s489 = sand.u32 %s237, 1
        %s490 = smul.addr %s489, 64
        %s491 = scalar_lea.vmem [#allocation13], %s490
        %p492 = pneg %p276
        %p493 = pneg %p273
        %s494 = sand.u32 %s263, 1
        %s495 = scalar_lea.sflag [#allocation15], %s494
        %s496 = sand.u32 %s263, 1
        %s497 = smul.addr %s496, 64
        %s498 = scalar_lea.vmem [#allocation14], %s497
        %p499 = pneg %p302
        %p500 = pneg %p299
        %s501 = smul.u32 8, %s35
        %p502 = scmp.lt.s32.totalorder %s501, 15
        %s503 = scalar_select %p502, %s501, 15
        %s504 = smul.addr %s503, 8
        %s505 = scalar_lea.vmem %s11, %s504
        %s506 = smul.u32 8, %s35
        %s507 = smul.u32 8, %s35
        %s508 = smul.u32 8, %s35
        %s509 = smul.u32 8, %s35
        %p510 = scmp.lt.s32.totalorder %s509, 15
        %s511 = scalar_select %p510, %s509, 15
        %s512 = smul.addr %s511, 8
        %s513 = scalar_lea.vmem %s11, %s512
        %s514 = smul.u32 8, %s35
        %v516 = vld [vmem:[%s431] sm:$0xff]
        %v517 = vld [vmem:[%s431 + $0x8] sm:$0xff]
        %v518 = vld [vmem:[%s431 + $0x10] sm:$0xff]
        %v519 = vld [vmem:[%s431 + $0x18] sm:$0xff]
        %v520 = vld [vmem:[%s431 + $0x20] sm:$0xff]
        %v521 = vld [vmem:[%s431 + $0x28] sm:$0xff]
        %v522 = vld [vmem:[%s431 + $0x30] sm:$0xff]
        %v523 = vld [vmem:[%s431 + $0x38] sm:$0xff]
        %v524 = vpack.c.bf16 %v517, %v516
        %v525 = vpack.c.bf16 %v519, %v518
        %v526 = vpack.c.bf16 %v521, %v520
        %v527 = vpack.c.bf16 %v523, %v522
        %v528 = vld [vmem:[#allocation5] sm:$0xff]
        %v529 = vld [vmem:[#allocation5 + $0x8] sm:$0xf]
        %v530 = vld [vmem:[#allocation5 + $0xc] sm:$0xff]
        %v531 = vld [vmem:[#allocation5 + $0x14] sm:$0xf]
        %v532 = vld [vmem:[#allocation5 + $0x18] sm:$0xff]
        %v533 = vld [vmem:[#allocation5 + $0x20] sm:$0xf]
        %v534 = vld [vmem:[#allocation5 + $0x24] sm:$0xff]
        %v535 = vld [vmem:[#allocation5 + $0x2c] sm:$0xf]
        %v536 = vld [vmem:[#allocation5 + $0x30] sm:$0xff]
        %v537 = vld [vmem:[#allocation5 + $0x38] sm:$0xf]
        %v538 = vld [vmem:[#allocation5 + $0x3c] sm:$0xff]
        %v539 = vld [vmem:[#allocation5 + $0x44] sm:$0xf]
        %v540 = vld [vmem:[#allocation5 + $0x48] sm:$0xff]
        %v541 = vld [vmem:[#allocation5 + $0x50] sm:$0xf]
        %v542 = vld [vmem:[#allocation5 + $0x54] sm:$0xff]
        %v543 = vld [vmem:[#allocation5 + $0x5c] sm:$0xf]
        %v544 = vld [vmem:[#allocation5 + $0x60] sm:$0xff]
        %v545 = vld [vmem:[#allocation5 + $0x68] sm:$0xf]
        %v546 = vld [vmem:[#allocation5 + $0x6c] sm:$0xff]
        %v547 = vld [vmem:[#allocation5 + $0x74] sm:$0xf]
        %v548 = vld [vmem:[#allocation5 + $0x78] sm:$0xff]
        %v549 = vld [vmem:[#allocation5 + $0x80] sm:$0xf]
        %v550 = vld [vmem:[#allocation5 + $0x84] sm:$0xff]
        %v551 = vld [vmem:[#allocation5 + $0x8c] sm:$0xf]
        %v552 = vld [vmem:[#allocation5 + $0x90] sm:$0xff]
        %v553 = vld [vmem:[#allocation5 + $0x98] sm:$0xf]
        %v554 = vld [vmem:[#allocation5 + $0x9c] sm:$0xff]
        %v555 = vld [vmem:[#allocation5 + $0xa4] sm:$0xf]
        %v556 = vld [vmem:[#allocation5 + $0xa8] sm:$0xff]
        %v557 = vld [vmem:[#allocation5 + $0xb0] sm:$0xf]
        %v558 = vld [vmem:[#allocation5 + $0xb4] sm:$0xff]
        %v559 = vld [vmem:[#allocation5 + $0xbc] sm:$0xf]
        %v560 = vld [vmem:[#allocation7] sm:$0x7]
        %v562 = vperm.slane %v560, 0
        %v563 = vperm.slane %v560, 1
        %v564 = vperm.slane %v560, 2
        %v600 = vunpack.c.l.b16 %v528
        %v601 = vunpack.c.h.b16 %v528
        %v602 = vunpack.c.l.b16 %v529
        %v603 = vunpack.c.l.b16 %v530
        %v604 = vunpack.c.h.b16 %v530
        %v605 = vunpack.c.l.b16 %v531
        %v606 = vunpack.c.l.b16 %v532
        %v607 = vunpack.c.h.b16 %v532
        %v608 = vunpack.c.l.b16 %v533
        %v609 = vunpack.c.l.b16 %v534
        %v610 = vunpack.c.h.b16 %v534
        %v611 = vunpack.c.l.b16 %v535
        %v612 = vunpack.c.l.b16 %v536
        %v613 = vunpack.c.h.b16 %v536
        %v614 = vunpack.c.l.b16 %v537
        %v615 = vunpack.c.l.b16 %v538
        %v616 = vunpack.c.h.b16 %v538
        %v617 = vunpack.c.l.b16 %v539
        %v618 = vunpack.c.l.b16 %v540
        %v619 = vunpack.c.h.b16 %v540
        %v620 = vunpack.c.l.b16 %v541
        %v621 = vunpack.c.l.b16 %v542
        %v622 = vunpack.c.h.b16 %v542
        %v623 = vunpack.c.l.b16 %v543
        %v624 = vunpack.c.l.b16 %v544
        %v625 = vunpack.c.h.b16 %v544
        %v626 = vunpack.c.l.b16 %v545
        %v627 = vunpack.c.l.b16 %v546
        %v628 = vunpack.c.h.b16 %v546
        %v629 = vunpack.c.l.b16 %v547
        %v630 = vunpack.c.l.b16 %v548
        %v631 = vunpack.c.h.b16 %v548
        %v632 = vunpack.c.l.b16 %v549
        %v633 = vunpack.c.l.b16 %v550
        %v634 = vunpack.c.h.b16 %v550
        %v635 = vunpack.c.l.b16 %v551
        %v636 = vunpack.c.l.b16 %v552
        %v637 = vunpack.c.h.b16 %v552
        %v638 = vunpack.c.l.b16 %v553
        %v639 = vunpack.c.l.b16 %v554
        %v640 = vunpack.c.h.b16 %v554
        %v641 = vunpack.c.l.b16 %v555
        %v642 = vunpack.c.l.b16 %v556
        %v643 = vunpack.c.h.b16 %v556
        %v644 = vunpack.c.l.b16 %v557
        %v645 = vunpack.c.l.b16 %v558
        %v646 = vunpack.c.h.b16 %v558
        %v647 = vunpack.c.l.b16 %v559
        %v648 = vpack.c.b16 %v603, %v600
        %v649 = vpack.c.b16 %v604, %v601
        %v650 = vpack.c.b16 %v605, %v602
        %v651 = vpack.c.b16 %v609, %v606
        %v652 = vpack.c.b16 %v610, %v607
        %v653 = vpack.c.b16 %v611, %v608
        %v654 = vpack.c.b16 %v615, %v612
        %v655 = vpack.c.b16 %v616, %v613
        %v656 = vpack.c.b16 %v617, %v614
        %v657 = vpack.c.b16 %v621, %v618
        %v658 = vpack.c.b16 %v622, %v619
        %v659 = vpack.c.b16 %v623, %v620
        %v660 = vpack.c.b16 %v627, %v624
        %v661 = vpack.c.b16 %v628, %v625
        %v662 = vpack.c.b16 %v629, %v626
        %v663 = vpack.c.b16 %v633, %v630
        %v664 = vpack.c.b16 %v634, %v631
        %v665 = vpack.c.b16 %v635, %v632
        %v666 = vpack.c.b16 %v639, %v636
        %v667 = vpack.c.b16 %v640, %v637
        %v668 = vpack.c.b16 %v641, %v638
        %v669 = vpack.c.b16 %v645, %v642
        %v670 = vpack.c.b16 %v646, %v643
        %v671 = vpack.c.b16 %v647, %v644
        %696 = vmatpush.bf16.msra.mxu0 %v669
        %697 = vmatpush.bf16.msra.mxu0 %v666
        %698 = vmatpush.bf16.msra.mxu0 %v663
        %699 = vmatpush.bf16.msra.mxu0 %v660
        %700 = vmatpush.bf16.msra.mxu0 %v657
        %701 = vmatpush.bf16.msra.mxu0 %v654
        %702 = vmatpush.bf16.msra.mxu0 %v651
        %703 = vmatpush.bf16.msra.mxu0 %v648
        %704 = vmatmul.bf16.gmra.mxu0 %v524
        %v705 = vpop.f32.mrf.mxu0
        %v706 = vadd.f32 %v562, %v705
        %v707 = vpop.f32.mrf.mxu0
        %v708 = vadd.f32 %v562, %v707
        %709 = vmatmul.bf16.gmra.mxu0 %v525
        %v710 = vpop.f32.mrf.mxu0
        %v711 = vadd.f32 %v562, %v710
        %v712 = vpop.f32.mrf.mxu0
        %v713 = vadd.f32 %v562, %v712
        %714 = vmatmul.bf16.gmra.mxu0 %v526
        %v715 = vpop.f32.mrf.mxu0
        %v716 = vadd.f32 %v562, %v715
        %v717 = vpop.f32.mrf.mxu0
        %v718 = vadd.f32 %v562, %v717
        %719 = vmatmul.bf16.gmra.mxu0 %v527
        %v720 = vpop.f32.mrf.mxu0
        %v721 = vadd.f32 %v562, %v720
        %v722 = vpop.f32.mrf.mxu0
        %v723 = vadd.f32 %v562, %v722
        %724 = vdwg.mxu0
        %725 = vmatpush.bf16.msra.mxu0 %v670
        %726 = vmatpush.bf16.msra.mxu0 %v667
        %727 = vmatpush.bf16.msra.mxu0 %v664
        %728 = vmatpush.bf16.msra.mxu0 %v661
        %729 = vmatpush.bf16.msra.mxu0 %v658
        %730 = vmatpush.bf16.msra.mxu0 %v655
        %731 = vmatpush.bf16.msra.mxu0 %v652
        %732 = vmatpush.bf16.msra.mxu0 %v649
        %733 = vmatmul.bf16.gmra.mxu0 %v524
        %v734 = vpop.f32.mrf.mxu0
        %v735 = vadd.f32 %v563, %v734
        %v736 = vpop.f32.mrf.mxu0
        %v737 = vadd.f32 %v563, %v736
        %738 = vmatmul.bf16.gmra.mxu0 %v525
        %v739 = vpop.f32.mrf.mxu0
        %v740 = vadd.f32 %v563, %v739
        %v741 = vpop.f32.mrf.mxu0
        %v742 = vadd.f32 %v563, %v741
        %743 = vmatmul.bf16.gmra.mxu0 %v526
        %v744 = vpop.f32.mrf.mxu0
        %v745 = vadd.f32 %v563, %v744
        %v746 = vpop.f32.mrf.mxu0
        %v747 = vadd.f32 %v563, %v746
        %748 = vmatmul.bf16.gmra.mxu0 %v527
        %v749 = vpop.f32.mrf.mxu0
        %v750 = vadd.f32 %v563, %v749
        %v751 = vpop.f32.mrf.mxu0
        %v752 = vadd.f32 %v563, %v751
        %753 = vdwg.mxu0
        %754 = vmatpush.bf16.msra.mxu0 %v671
        %755 = vmatpush.bf16.msra.mxu0 %v668
        %756 = vmatpush.bf16.msra.mxu0 %v665
        %757 = vmatpush.bf16.msra.mxu0 %v662
        %758 = vmatpush.bf16.msra.mxu0 %v659
        %759 = vmatpush.bf16.msra.mxu0 %v656
        %760 = vmatpush.bf16.msra.mxu0 %v653
        %761 = vmatpush.bf16.msra.mxu0 %v650
        %762 = vmatmul.bf16.gmra.mxu0 %v524
        %v763 = vpop.f32.mrf.mxu0
        %v764 = vadd.f32 %v564, %v763
        %v765 = vpop.f32.mrf.mxu0
        %v766 = vadd.f32 %v564, %v765
        %767 = vmatmul.bf16.gmra.mxu0 %v525
        %v768 = vpop.f32.mrf.mxu0
        %v769 = vadd.f32 %v564, %v768
        %v770 = vpop.f32.mrf.mxu0
        %v771 = vadd.f32 %v564, %v770
        %772 = vmatmul.bf16.gmra.mxu0 %v526
        %v773 = vpop.f32.mrf.mxu0
        %v774 = vadd.f32 %v564, %v773
        %v775 = vpop.f32.mrf.mxu0
        %v776 = vadd.f32 %v564, %v775
        %777 = vmatmul.bf16.gmra.mxu0 %v527
        %v778 = vpop.f32.mrf.mxu0
        %v779 = vadd.f32 %v564, %v778
        %v780 = vpop.f32.mrf.mxu0
        %v781 = vadd.f32 %v564, %v780
        %782 = vdwg.mxu0
        %v783 = vpack.c.bf16 %v706, %v706
        %v784 = vpack.c.bf16 %v708, %v708
        %v785 = vpack.c.bf16 %v711, %v711
        %v786 = vpack.c.bf16 %v713, %v713
        %v787 = vpack.c.bf16 %v716, %v716
        %v788 = vpack.c.bf16 %v718, %v718
        %v789 = vpack.c.bf16 %v721, %v721
        %v790 = vpack.c.bf16 %v723, %v723
        %v791 = vpack.c.bf16 %v735, %v735
        %v792 = vpack.c.bf16 %v737, %v737
        %v793 = vpack.c.bf16 %v740, %v740
        %v794 = vpack.c.bf16 %v742, %v742
        %v795 = vpack.c.bf16 %v745, %v745
        %v796 = vpack.c.bf16 %v747, %v747
        %v797 = vpack.c.bf16 %v750, %v750
        %v798 = vpack.c.bf16 %v752, %v752
        %799 = vmatpush.bf16.xpose.msra.mxu0 0
        %800 = vmatpush.bf16.xpose.msra.mxu0 0
        %801 = vmatpush.bf16.xpose.msra.mxu0 0
        %802 = vmatpush.bf16.xpose.msra.mxu0 0
        %803 = vmatpush.bf16.xpose.msra.mxu0 0
        %804 = vmatpush.bf16.xpose.msra.mxu0 0
        %805 = vmatpush.bf16.xpose.msra.mxu0 0
        %806 = vmatpush.bf16.xpose.msra.mxu0 %v791
        %807 = vmatmul.bf16.gmra.mxu0 %v783
        %v808 = vpop.f32.mrf.mxu0
        %v809 = vadd.f32 0.0, %v808
        %v810 = vpop.f32.mrf.mxu0
        %811 = vdwg.mxu0
        %812 = vmatpush.bf16.xpose.msra.mxu0 0
        %813 = vmatpush.bf16.xpose.msra.mxu0 0
        %814 = vmatpush.bf16.xpose.msra.mxu0 0
        %815 = vmatpush.bf16.xpose.msra.mxu0 0
        %816 = vmatpush.bf16.xpose.msra.mxu0 0
        %817 = vmatpush.bf16.xpose.msra.mxu0 0
        %818 = vmatpush.bf16.xpose.msra.mxu0 0
        %819 = vmatpush.bf16.xpose.msra.mxu0 %v792
        %820 = vmatmul.bf16.gmra.mxu0 %v784
        %v821 = vpop.f32.mrf.mxu0
        %v822 = vadd.f32 0.0, %v821
        %v823 = vpop.f32.mrf.mxu0
        %824 = vdwg.mxu0
        %825 = vmatpush.bf16.xpose.msra.mxu0 0
        %826 = vmatpush.bf16.xpose.msra.mxu0 0
        %827 = vmatpush.bf16.xpose.msra.mxu0 0
        %828 = vmatpush.bf16.xpose.msra.mxu0 0
        %829 = vmatpush.bf16.xpose.msra.mxu0 0
        %830 = vmatpush.bf16.xpose.msra.mxu0 0
        %831 = vmatpush.bf16.xpose.msra.mxu0 0
        %832 = vmatpush.bf16.xpose.msra.mxu0 %v793
        %833 = vmatmul.bf16.gmra.mxu0 %v785
        %v834 = vpop.f32.mrf.mxu0
        %v835 = vadd.f32 0.0, %v834
        %v836 = vpop.f32.mrf.mxu0
        %837 = vdwg.mxu0
        %838 = vmatpush.bf16.xpose.msra.mxu0 0
        %839 = vmatpush.bf16.xpose.msra.mxu0 0
        %840 = vmatpush.bf16.xpose.msra.mxu0 0
        %841 = vmatpush.bf16.xpose.msra.mxu0 0
        %842 = vmatpush.bf16.xpose.msra.mxu0 0
        %843 = vmatpush.bf16.xpose.msra.mxu0 0
        %844 = vmatpush.bf16.xpose.msra.mxu0 0
        %845 = vmatpush.bf16.xpose.msra.mxu0 %v794
        %846 = vmatmul.bf16.gmra.mxu0 %v786
        %v847 = vpop.f32.mrf.mxu0
        %v848 = vadd.f32 0.0, %v847
        %v849 = vpop.f32.mrf.mxu0
        %850 = vdwg.mxu0
        %851 = vmatpush.bf16.xpose.msra.mxu0 0
        %852 = vmatpush.bf16.xpose.msra.mxu0 0
        %853 = vmatpush.bf16.xpose.msra.mxu0 0
        %854 = vmatpush.bf16.xpose.msra.mxu0 0
        %855 = vmatpush.bf16.xpose.msra.mxu0 0
        %856 = vmatpush.bf16.xpose.msra.mxu0 0
        %857 = vmatpush.bf16.xpose.msra.mxu0 0
        %858 = vmatpush.bf16.xpose.msra.mxu0 %v795
        %859 = vmatmul.bf16.gmra.mxu0 %v787
        %v860 = vpop.f32.mrf.mxu0
        %v861 = vadd.f32 0.0, %v860
        %v862 = vpop.f32.mrf.mxu0
        %863 = vdwg.mxu0
        %864 = vmatpush.bf16.xpose.msra.mxu0 0
        %865 = vmatpush.bf16.xpose.msra.mxu0 0
        %866 = vmatpush.bf16.xpose.msra.mxu0 0
        %867 = vmatpush.bf16.xpose.msra.mxu0 0
        %868 = vmatpush.bf16.xpose.msra.mxu0 0
        %869 = vmatpush.bf16.xpose.msra.mxu0 0
        %870 = vmatpush.bf16.xpose.msra.mxu0 0
        %871 = vmatpush.bf16.xpose.msra.mxu0 %v796
        %872 = vmatmul.bf16.gmra.mxu0 %v788
        %v873 = vpop.f32.mrf.mxu0
        %v874 = vadd.f32 0.0, %v873
        %v875 = vpop.f32.mrf.mxu0
        %876 = vdwg.mxu0
        %877 = vmatpush.bf16.xpose.msra.mxu0 0
        %878 = vmatpush.bf16.xpose.msra.mxu0 0
        %879 = vmatpush.bf16.xpose.msra.mxu0 0
        %880 = vmatpush.bf16.xpose.msra.mxu0 0
        %881 = vmatpush.bf16.xpose.msra.mxu0 0
        %882 = vmatpush.bf16.xpose.msra.mxu0 0
        %883 = vmatpush.bf16.xpose.msra.mxu0 0
        %884 = vmatpush.bf16.xpose.msra.mxu0 %v797
        %885 = vmatmul.bf16.gmra.mxu0 %v789
        %v886 = vpop.f32.mrf.mxu0
        %v887 = vadd.f32 0.0, %v886
        %v888 = vpop.f32.mrf.mxu0
        %889 = vdwg.mxu0
        %890 = vmatpush.bf16.xpose.msra.mxu0 0
        %891 = vmatpush.bf16.xpose.msra.mxu0 0
        %892 = vmatpush.bf16.xpose.msra.mxu0 0
        %893 = vmatpush.bf16.xpose.msra.mxu0 0
        %894 = vmatpush.bf16.xpose.msra.mxu0 0
        %895 = vmatpush.bf16.xpose.msra.mxu0 0
        %896 = vmatpush.bf16.xpose.msra.mxu0 0
        %897 = vmatpush.bf16.xpose.msra.mxu0 %v798
        %898 = vmatmul.bf16.gmra.mxu0 %v790
        %v899 = vpop.f32.mrf.mxu0
        %v900 = vadd.f32 0.0, %v899
        %v901 = vpop.f32.mrf.mxu0
        %902 = vdwg.mxu0
        %vm903 = vcmask 64512
        %v904 = vsel %vm903, %v809, -inf
        %905 = vmax.xlane.f32.xlu0 %v904
        %v906 = vpop.xlane.xlu0 %905
        %v907 = vsel %vm903, %v822, -inf
        %908 = vmax.xlane.f32.xlu0 %v907
        %v909 = vpop.xlane.xlu0 %908
        %v910 = vsel %vm903, %v835, -inf
        %911 = vmax.xlane.f32.xlu0 %v910
        %v912 = vpop.xlane.xlu0 %911
        %v913 = vsel %vm903, %v848, -inf
        %914 = vmax.xlane.f32.xlu0 %v913
        %v915 = vpop.xlane.xlu0 %914
        %v916 = vsel %vm903, %v861, -inf
        %917 = vmax.xlane.f32.xlu0 %v916
        %v918 = vpop.xlane.xlu0 %917
        %v919 = vsel %vm903, %v874, -inf
        %920 = vmax.xlane.f32.xlu0 %v919
        %v921 = vpop.xlane.xlu0 %920
        %v922 = vsel %vm903, %v887, -inf
        %923 = vmax.xlane.f32.xlu0 %v922
        %v924 = vpop.xlane.xlu0 %923
        %v925 = vsel %vm903, %v900, -inf
        %926 = vmax.xlane.f32.xlu0 %v925
        %v927 = vpop.xlane.xlu0 %926
        %v928 = vsub.f32 %v809, %v906
        %v929 = vsub.f32 %v822, %v909
        %v930 = vsub.f32 %v835, %v912
        %v931 = vsub.f32 %v848, %v915
        %v932 = vsub.f32 %v861, %v918
        %v933 = vsub.f32 %v874, %v921
        %v934 = vsub.f32 %v887, %v924
        %v935 = vsub.f32 %v900, %v927
        %v936 = vmul.f32 %v928, 1.442695
        %v937 = vpow.pop %v936
        %v938 = vmul.f32 %v929, 1.442695
        %v939 = vpow.pop %v938
        %v940 = vmul.f32 %v930, 1.442695
        %v941 = vpow.pop %v940
        %v942 = vmul.f32 %v931, 1.442695
        %v943 = vpow.pop %v942
        %v944 = vmul.f32 %v932, 1.442695
        %v945 = vpow.pop %v944
        %v946 = vmul.f32 %v933, 1.442695
        %v947 = vpow.pop %v946
        %v948 = vmul.f32 %v934, 1.442695
        %v949 = vpow.pop %v948
        %v950 = vmul.f32 %v935, 1.442695
        %v951 = vpow.pop %v950
        %v952 = vsel %vm903, %v937, 0.0
        %953 = vadd.xlane.f32.xlu0 %v952
        %v954 = vpop.xlane.xlu0 %953
        %v955 = vsel %vm903, %v939, 0.0
        %956 = vadd.xlane.f32.xlu0 %v955
        %v957 = vpop.xlane.xlu0 %956
        %v958 = vsel %vm903, %v941, 0.0
        %959 = vadd.xlane.f32.xlu0 %v958
        %v960 = vpop.xlane.xlu0 %959
        %v961 = vsel %vm903, %v943, 0.0
        %962 = vadd.xlane.f32.xlu0 %v961
        %v963 = vpop.xlane.xlu0 %962
        %v964 = vsel %vm903, %v945, 0.0
        %965 = vadd.xlane.f32.xlu0 %v964
        %v966 = vpop.xlane.xlu0 %965
        %v967 = vsel %vm903, %v947, 0.0
        %968 = vadd.xlane.f32.xlu0 %v967
        %v969 = vpop.xlane.xlu0 %968
        %v970 = vsel %vm903, %v949, 0.0
        %971 = vadd.xlane.f32.xlu0 %v970
        %v972 = vpop.xlane.xlu0 %971
        %v973 = vsel %vm903, %v951, 0.0
        %974 = vadd.xlane.f32.xlu0 %v973
        %v975 = vpop.xlane.xlu0 %974
        %v976 = vrcp.pop %v954
        %v977 = vrcp.pop %v957
        %v978 = vrcp.pop %v960
        %v979 = vrcp.pop %v963
        %v980 = vrcp.pop %v966
        %v981 = vrcp.pop %v969
        %v982 = vrcp.pop %v972
        %v983 = vrcp.pop %v975
        %v984 = vmul.f32 %v937, %v976
        %v985 = vmul.f32 %v939, %v977
        %v986 = vmul.f32 %v941, %v978
        %v987 = vmul.f32 %v943, %v979
        %v988 = vmul.f32 %v945, %v980
        %v989 = vmul.f32 %v947, %v981
        %v990 = vmul.f32 %v949, %v982
        %v991 = vmul.f32 %v951, %v983
        %v992 = vpack.c.bf16 %v984, %v984
        %v993 = vpack.c.bf16 %v985, %v985
        %v994 = vpack.c.bf16 %v986, %v986
        %v995 = vpack.c.bf16 %v987, %v987
        %v996 = vpack.c.bf16 %v988, %v988
        %v997 = vpack.c.bf16 %v989, %v989
        %v998 = vpack.c.bf16 %v990, %v990
        %v999 = vpack.c.bf16 %v991, %v991
        %v1000 = vpack.c.bf16 %v764, %v764
        %v1001 = vpack.c.bf16 %v766, %v766
        %v1002 = vpack.c.bf16 %v769, %v769
        %v1003 = vpack.c.bf16 %v771, %v771
        %v1004 = vpack.c.bf16 %v774, %v774
        %v1005 = vpack.c.bf16 %v776, %v776
        %v1006 = vpack.c.bf16 %v779, %v779
        %v1007 = vpack.c.bf16 %v781, %v781
        %v1009 = vsel %vm903, %v992, 0
        %vm1011 = vcmask 1043456
        %v1013 = vsel %vm1011, %v1000, 0
        %1015 = vmatpush.bf16.msra.mxu0 0
        %1016 = vmatpush.bf16.msra.mxu0 0
        %1017 = vmatpush.bf16.msra.mxu0 0
        %1018 = vmatpush.bf16.msra.mxu0 0
        %1019 = vmatpush.bf16.msra.mxu0 0
        %1020 = vmatpush.bf16.msra.mxu0 0
        %1021 = vmatpush.bf16.msra.mxu0 0
        %1022 = vmatpush.bf16.msra.mxu0 %v1013
        %1023 = vmatmul.bf16.gmra.mxu0 %v1009
        %v1024 = vpop.f32.mrf.mxu0
        %v1025 = vadd.f32 0.0, %v1024
        %v1026 = vpop.f32.mrf.mxu0
        %1027 = vdwg.mxu0
        %v1029 = vsel %vm903, %v993, 0
        %v1032 = vsel %vm1011, %v1001, 0
        %1034 = vmatpush.bf16.msra.mxu0 0
        %1035 = vmatpush.bf16.msra.mxu0 0
        %1036 = vmatpush.bf16.msra.mxu0 0
        %1037 = vmatpush.bf16.msra.mxu0 0
        %1038 = vmatpush.bf16.msra.mxu0 0
        %1039 = vmatpush.bf16.msra.mxu0 0
        %1040 = vmatpush.bf16.msra.mxu0 0
        %1041 = vmatpush.bf16.msra.mxu0 %v1032
        %1042 = vmatmul.bf16.gmra.mxu0 %v1029
        %v1043 = vpop.f32.mrf.mxu0
        %v1044 = vadd.f32 0.0, %v1043
        %v1045 = vpop.f32.mrf.mxu0
        %1046 = vdwg.mxu0
        %v1048 = vsel %vm903, %v994, 0
        %v1051 = vsel %vm1011, %v1002, 0
        %1053 = vmatpush.bf16.msra.mxu0 0
        %1054 = vmatpush.bf16.msra.mxu0 0
        %1055 = vmatpush.bf16.msra.mxu0 0
        %1056 = vmatpush.bf16.msra.mxu0 0
        %1057 = vmatpush.bf16.msra.mxu0 0
        %1058 = vmatpush.bf16.msra.mxu0 0
        %1059 = vmatpush.bf16.msra.mxu0 0
        %1060 = vmatpush.bf16.msra.mxu0 %v1051
        %1061 = vmatmul.bf16.gmra.mxu0 %v1048
        %v1062 = vpop.f32.mrf.mxu0
        %v1063 = vadd.f32 0.0, %v1062
        %v1064 = vpop.f32.mrf.mxu0
        %1065 = vdwg.mxu0
        %v1067 = vsel %vm903, %v995, 0
        %v1070 = vsel %vm1011, %v1003, 0
        %1072 = vmatpush.bf16.msra.mxu0 0
        %1073 = vmatpush.bf16.msra.mxu0 0
        %1074 = vmatpush.bf16.msra.mxu0 0
        %1075 = vmatpush.bf16.msra.mxu0 0
        %1076 = vmatpush.bf16.msra.mxu0 0
        %1077 = vmatpush.bf16.msra.mxu0 0
        %1078 = vmatpush.bf16.msra.mxu0 0
        %1079 = vmatpush.bf16.msra.mxu0 %v1070
        %1080 = vmatmul.bf16.gmra.mxu0 %v1067
        %v1081 = vpop.f32.mrf.mxu0
        %v1082 = vadd.f32 0.0, %v1081
        %v1083 = vpop.f32.mrf.mxu0
        %1084 = vdwg.mxu0
        %v1086 = vsel %vm903, %v996, 0
        %v1089 = vsel %vm1011, %v1004, 0
        %1091 = vmatpush.bf16.msra.mxu0 0
        %1092 = vmatpush.bf16.msra.mxu0 0
        %1093 = vmatpush.bf16.msra.mxu0 0
        %1094 = vmatpush.bf16.msra.mxu0 0
        %1095 = vmatpush.bf16.msra.mxu0 0
        %1096 = vmatpush.bf16.msra.mxu0 0
        %1097 = vmatpush.bf16.msra.mxu0 0
        %1098 = vmatpush.bf16.msra.mxu0 %v1089
        %1099 = vmatmul.bf16.gmra.mxu0 %v1086
        %v1100 = vpop.f32.mrf.mxu0
        %v1101 = vadd.f32 0.0, %v1100
        %v1102 = vpop.f32.mrf.mxu0
        %1103 = vdwg.mxu0
        %v1105 = vsel %vm903, %v997, 0
        %v1108 = vsel %vm1011, %v1005, 0
        %1110 = vmatpush.bf16.msra.mxu0 0
        %1111 = vmatpush.bf16.msra.mxu0 0
        %1112 = vmatpush.bf16.msra.mxu0 0
        %1113 = vmatpush.bf16.msra.mxu0 0
        %1114 = vmatpush.bf16.msra.mxu0 0
        %1115 = vmatpush.bf16.msra.mxu0 0
        %1116 = vmatpush.bf16.msra.mxu0 0
        %1117 = vmatpush.bf16.msra.mxu0 %v1108
        %1118 = vmatmul.bf16.gmra.mxu0 %v1105
        %v1119 = vpop.f32.mrf.mxu0
        %v1120 = vadd.f32 0.0, %v1119
        %v1121 = vpop.f32.mrf.mxu0
        %1122 = vdwg.mxu0
        %v1124 = vsel %vm903, %v998, 0
        %v1127 = vsel %vm1011, %v1006, 0
        %1129 = vmatpush.bf16.msra.mxu0 0
        %1130 = vmatpush.bf16.msra.mxu0 0
        %1131 = vmatpush.bf16.msra.mxu0 0
        %1132 = vmatpush.bf16.msra.mxu0 0
        %1133 = vmatpush.bf16.msra.mxu0 0
        %1134 = vmatpush.bf16.msra.mxu0 0
        %1135 = vmatpush.bf16.msra.mxu0 0
        %1136 = vmatpush.bf16.msra.mxu0 %v1127
        %1137 = vmatmul.bf16.gmra.mxu0 %v1124
        %v1138 = vpop.f32.mrf.mxu0
        %v1139 = vadd.f32 0.0, %v1138
        %v1140 = vpop.f32.mrf.mxu0
        %1141 = vdwg.mxu0
        %v1143 = vsel %vm903, %v999, 0
        %v1146 = vsel %vm1011, %v1007, 0
        %1148 = vmatpush.bf16.msra.mxu0 0
        %1149 = vmatpush.bf16.msra.mxu0 0
        %1150 = vmatpush.bf16.msra.mxu0 0
        %1151 = vmatpush.bf16.msra.mxu0 0
        %1152 = vmatpush.bf16.msra.mxu0 0
        %1153 = vmatpush.bf16.msra.mxu0 0
        %1154 = vmatpush.bf16.msra.mxu0 0
        %1155 = vmatpush.bf16.msra.mxu0 %v1146
        %1156 = vmatmul.bf16.gmra.mxu0 %v1143
        %v1157 = vpop.f32.mrf.mxu0
        %v1158 = vadd.f32 0.0, %v1157
        %v1159 = vpop.f32.mrf.mxu0
        %1160 = vdwg.mxu0
        %v1161 = vpack.c.bf16 %v1044, %v1025
        %v1162 = vpack.c.bf16 %v1082, %v1063
        %v1163 = vpack.c.bf16 %v1120, %v1101
        %v1164 = vpack.c.bf16 %v1158, %v1139
        %v1165 = vld [vmem:[#allocation8] sm:$0xf]
        %v1166 = vld [vmem:[#allocation8 + $0x8] sm:$0xf]
        %v1167 = vld [vmem:[#allocation8 + $0x10] sm:$0xf]
        %v1168 = vld [vmem:[#allocation8 + $0x18] sm:$0xf]
        %v1169 = vld [vmem:[#allocation8 + $0x20] sm:$0xf]
        %v1170 = vld [vmem:[#allocation8 + $0x28] sm:$0xf]
        %v1171 = vld [vmem:[#allocation8 + $0x30] sm:$0xf]
        %v1172 = vld [vmem:[#allocation8 + $0x38] sm:$0xf]
        %v1173 = vld [vmem:[#allocation8 + $0x40] sm:$0xf]
        %v1174 = vld [vmem:[#allocation8 + $0x48] sm:$0xf]
        %v1175 = vld [vmem:[#allocation8 + $0x50] sm:$0xf]
        %v1176 = vld [vmem:[#allocation8 + $0x58] sm:$0xf]
        %v1177 = vld [vmem:[#allocation8 + $0x60] sm:$0xf]
        %v1178 = vld [vmem:[#allocation8 + $0x68] sm:$0xf]
        %v1179 = vld [vmem:[#allocation8 + $0x70] sm:$0xf]
        %v1180 = vld [vmem:[#allocation8 + $0x78] sm:$0xf]
        %v1181 = vld [vmem:[%s4] sm:$0x1]
        %v1183 = vperm.slane %v1181, 0
        %v1201 = vunpack.c.l.b16 %v1165
        %v1202 = vunpack.c.l.b16 %v1166
        %v1203 = vunpack.c.l.b16 %v1167
        %v1204 = vunpack.c.l.b16 %v1168
        %v1205 = vunpack.c.l.b16 %v1169
        %v1206 = vunpack.c.l.b16 %v1170
        %v1207 = vunpack.c.l.b16 %v1171
        %v1208 = vunpack.c.l.b16 %v1172
        %v1209 = vunpack.c.l.b16 %v1173
        %v1210 = vunpack.c.l.b16 %v1174
        %v1211 = vunpack.c.l.b16 %v1175
        %v1212 = vunpack.c.l.b16 %v1176
        %v1213 = vunpack.c.l.b16 %v1177
        %v1214 = vunpack.c.l.b16 %v1178
        %v1215 = vunpack.c.l.b16 %v1179
        %v1216 = vunpack.c.l.b16 %v1180
        %v1217 = vpack.c.b16 %v1202, %v1201
        %v1218 = vpack.c.b16 %v1204, %v1203
        %v1219 = vpack.c.b16 %v1206, %v1205
        %v1220 = vpack.c.b16 %v1208, %v1207
        %v1221 = vpack.c.b16 %v1210, %v1209
        %v1222 = vpack.c.b16 %v1212, %v1211
        %v1223 = vpack.c.b16 %v1214, %v1213
        %v1224 = vpack.c.b16 %v1216, %v1215
        %1233 = vmatpush.bf16.msra.mxu0 %v1224
        %1234 = vmatpush.bf16.msra.mxu0 %v1223
        %1235 = vmatpush.bf16.msra.mxu0 %v1222
        %1236 = vmatpush.bf16.msra.mxu0 %v1221
        %1237 = vmatpush.bf16.msra.mxu0 %v1220
        %1238 = vmatpush.bf16.msra.mxu0 %v1219
        %1239 = vmatpush.bf16.msra.mxu0 %v1218
        %1240 = vmatpush.bf16.msra.mxu0 %v1217
        %1241 = vmatmul.bf16.gmra.mxu0 %v1161
        %v1242 = vpop.f32.mrf.mxu0
        %v1243 = vadd.f32 %v1183, %v1242
        %v1244 = vpop.f32.mrf.mxu0
        %v1245 = vadd.f32 %v1183, %v1244
        %1246 = vmatmul.bf16.gmra.mxu0 %v1162
        %v1247 = vpop.f32.mrf.mxu0
        %v1248 = vadd.f32 %v1183, %v1247
        %v1249 = vpop.f32.mrf.mxu0
        %v1250 = vadd.f32 %v1183, %v1249
        %1251 = vmatmul.bf16.gmra.mxu0 %v1163
        %v1252 = vpop.f32.mrf.mxu0
        %v1253 = vadd.f32 %v1183, %v1252
        %v1254 = vpop.f32.mrf.mxu0
        %v1255 = vadd.f32 %v1183, %v1254
        %1256 = vmatmul.bf16.gmra.mxu0 %v1164
        %v1257 = vpop.f32.mrf.mxu0
        %v1258 = vadd.f32 %v1183, %v1257
        %v1259 = vpop.f32.mrf.mxu0
        %v1260 = vadd.f32 %v1183, %v1259
        %1261 = vdwg.mxu0
        %v1262 = vtanh.pop %v1243
        %v1263 = vtanh.pop %v1245
        %v1264 = vtanh.pop %v1248
        %v1265 = vtanh.pop %v1250
        %v1266 = vtanh.pop %v1253
        %v1267 = vtanh.pop %v1255
        %v1268 = vtanh.pop %v1258
        %v1269 = vtanh.pop %v1260
        %v1270 = vpack.c.bf16 %v1263, %v1262
        %v1271 = vpack.c.bf16 %v1265, %v1264
        %v1272 = vpack.c.bf16 %v1267, %v1266
        %v1273 = vpack.c.bf16 %v1269, %v1268
        %v1274 = vld [vmem:[#allocation10] sm:$0xf]
        %v1275 = vld [vmem:[#allocation10 + $0x8] sm:$0xf]
        %v1276 = vld [vmem:[#allocation10 + $0x10] sm:$0xf]
        %v1277 = vld [vmem:[#allocation10 + $0x18] sm:$0xf]
        %v1278 = vld [vmem:[#allocation10 + $0x20] sm:$0xf]
        %v1279 = vld [vmem:[#allocation10 + $0x28] sm:$0xf]
        %v1280 = vld [vmem:[#allocation10 + $0x30] sm:$0xf]
        %v1281 = vld [vmem:[#allocation10 + $0x38] sm:$0xf]
        %v1282 = vld [vmem:[#allocation10 + $0x40] sm:$0xf]
        %v1283 = vld [vmem:[#allocation10 + $0x48] sm:$0xf]
        %v1284 = vld [vmem:[#allocation10 + $0x50] sm:$0xf]
        %v1285 = vld [vmem:[#allocation10 + $0x58] sm:$0xf]
        %v1286 = vld [vmem:[#allocation10 + $0x60] sm:$0xf]
        %v1287 = vld [vmem:[#allocation10 + $0x68] sm:$0xf]
        %v1288 = vld [vmem:[#allocation10 + $0x70] sm:$0xf]
        %v1289 = vld [vmem:[#allocation10 + $0x78] sm:$0xf]
        %v1290 = vld [vmem:[%s6] sm:$0x1]
        %v1292 = vperm.slane %v1290, 0
        %v1310 = vunpack.c.l.b16 %v1274
        %v1311 = vunpack.c.l.b16 %v1275
        %v1312 = vunpack.c.l.b16 %v1276
        %v1313 = vunpack.c.l.b16 %v1277
        %v1314 = vunpack.c.l.b16 %v1278
        %v1315 = vunpack.c.l.b16 %v1279
        %v1316 = vunpack.c.l.b16 %v1280
        %v1317 = vunpack.c.l.b16 %v1281
        %v1318 = vunpack.c.l.b16 %v1282
        %v1319 = vunpack.c.l.b16 %v1283
        %v1320 = vunpack.c.l.b16 %v1284
        %v1321 = vunpack.c.l.b16 %v1285
        %v1322 = vunpack.c.l.b16 %v1286
        %v1323 = vunpack.c.l.b16 %v1287
        %v1324 = vunpack.c.l.b16 %v1288
        %v1325 = vunpack.c.l.b16 %v1289
        %v1326 = vpack.c.b16 %v1311, %v1310
        %v1327 = vpack.c.b16 %v1313, %v1312
        %v1328 = vpack.c.b16 %v1315, %v1314
        %v1329 = vpack.c.b16 %v1317, %v1316
        %v1330 = vpack.c.b16 %v1319, %v1318
        %v1331 = vpack.c.b16 %v1321, %v1320
        %v1332 = vpack.c.b16 %v1323, %v1322
        %v1333 = vpack.c.b16 %v1325, %v1324
        %1342 = vmatpush.bf16.msra.mxu0 %v1333
        %1343 = vmatpush.bf16.msra.mxu0 %v1332
        %1344 = vmatpush.bf16.msra.mxu0 %v1331
        %1345 = vmatpush.bf16.msra.mxu0 %v1330
        %1346 = vmatpush.bf16.msra.mxu0 %v1329
        %1347 = vmatpush.bf16.msra.mxu0 %v1328
        %1348 = vmatpush.bf16.msra.mxu0 %v1327
        %1349 = vmatpush.bf16.msra.mxu0 %v1326
        %1350 = vmatmul.bf16.gmra.mxu0 %v1270
        %v1351 = vpop.f32.mrf.mxu0
        %v1352 = vadd.f32 %v1292, %v1351
        %v1353 = vpop.f32.mrf.mxu0
        %v1354 = vadd.f32 %v1292, %v1353
        %1355 = vmatmul.bf16.gmra.mxu0 %v1271
        %v1356 = vpop.f32.mrf.mxu0
        %v1357 = vadd.f32 %v1292, %v1356
        %v1358 = vpop.f32.mrf.mxu0
        %v1359 = vadd.f32 %v1292, %v1358
        %1360 = vmatmul.bf16.gmra.mxu0 %v1272
        %v1361 = vpop.f32.mrf.mxu0
        %v1362 = vadd.f32 %v1292, %v1361
        %v1363 = vpop.f32.mrf.mxu0
        %v1364 = vadd.f32 %v1292, %v1363
        %1365 = vmatmul.bf16.gmra.mxu0 %v1273
        %v1366 = vpop.f32.mrf.mxu0
        %v1367 = vadd.f32 %v1292, %v1366
        %v1368 = vpop.f32.mrf.mxu0
        %v1369 = vadd.f32 %v1292, %v1368
        %1370 = vdwg.mxu0
        %v1371 = vtanh.pop %v1352
        %v1372 = vtanh.pop %v1354
        %v1373 = vtanh.pop %v1357
        %v1374 = vtanh.pop %v1359
        %v1375 = vtanh.pop %v1362
        %v1376 = vtanh.pop %v1364
        %v1377 = vtanh.pop %v1367
        %v1378 = vtanh.pop %v1369
        %v1379 = vpack.c.bf16 %v1372, %v1371
        %v1380 = vpack.c.bf16 %v1374, %v1373
        %v1381 = vpack.c.bf16 %v1376, %v1375
        %v1382 = vpack.c.bf16 %v1378, %v1377
        %v1383 = vld [vmem:[#allocation11] sm:$0xf]
        %v1384 = vld [vmem:[#allocation11 + $0x8] sm:$0xf]
        %v1385 = vld [vmem:[#allocation11 + $0x10] sm:$0xf]
        %v1386 = vld [vmem:[#allocation11 + $0x18] sm:$0xf]
        %v1387 = vld [vmem:[#allocation11 + $0x20] sm:$0xf]
        %v1388 = vld [vmem:[#allocation11 + $0x28] sm:$0xf]
        %v1389 = vld [vmem:[#allocation11 + $0x30] sm:$0xf]
        %v1390 = vld [vmem:[#allocation11 + $0x38] sm:$0xf]
        %v1391 = vld [vmem:[#allocation11 + $0x40] sm:$0xf]
        %v1392 = vld [vmem:[#allocation11 + $0x48] sm:$0xf]
        %v1393 = vld [vmem:[#allocation11 + $0x50] sm:$0xf]
        %v1394 = vld [vmem:[#allocation11 + $0x58] sm:$0xf]
        %v1395 = vld [vmem:[#allocation11 + $0x60] sm:$0xf]
        %v1396 = vld [vmem:[#allocation11 + $0x68] sm:$0xf]
        %v1397 = vld [vmem:[#allocation11 + $0x70] sm:$0xf]
        %v1398 = vld [vmem:[#allocation11 + $0x78] sm:$0xf]
        %v1399 = vld [vmem:[%s8] sm:$0x1]
        %v1401 = vperm.slane %v1399, 0
        %v1419 = vunpack.c.l.b16 %v1383
        %v1420 = vunpack.c.l.b16 %v1384
        %v1421 = vunpack.c.l.b16 %v1385
        %v1422 = vunpack.c.l.b16 %v1386
        %v1423 = vunpack.c.l.b16 %v1387
        %v1424 = vunpack.c.l.b16 %v1388
        %v1425 = vunpack.c.l.b16 %v1389
        %v1426 = vunpack.c.l.b16 %v1390
        %v1427 = vunpack.c.l.b16 %v1391
        %v1428 = vunpack.c.l.b16 %v1392
        %v1429 = vunpack.c.l.b16 %v1393
        %v1430 = vunpack.c.l.b16 %v1394
        %v1431 = vunpack.c.l.b16 %v1395
        %v1432 = vunpack.c.l.b16 %v1396
        %v1433 = vunpack.c.l.b16 %v1397
        %v1434 = vunpack.c.l.b16 %v1398
        %v1435 = vpack.c.b16 %v1420, %v1419
        %v1436 = vpack.c.b16 %v1422, %v1421
        %v1437 = vpack.c.b16 %v1424, %v1423
        %v1438 = vpack.c.b16 %v1426, %v1425
        %v1439 = vpack.c.b16 %v1428, %v1427
        %v1440 = vpack.c.b16 %v1430, %v1429
        %v1441 = vpack.c.b16 %v1432, %v1431
        %v1442 = vpack.c.b16 %v1434, %v1433
        %1451 = vmatpush.bf16.msra.mxu0 %v1442
        %1452 = vmatpush.bf16.msra.mxu0 %v1441
        %1453 = vmatpush.bf16.msra.mxu0 %v1440
        %1454 = vmatpush.bf16.msra.mxu0 %v1439
        %1455 = vmatpush.bf16.msra.mxu0 %v1438
        %1456 = vmatpush.bf16.msra.mxu0 %v1437
        %1457 = vmatpush.bf16.msra.mxu0 %v1436
        %1458 = vmatpush.bf16.msra.mxu0 %v1435
        %1459 = vmatmul.bf16.gmra.mxu0 %v1379
        %v1460 = vpop.f32.mrf.mxu0
        %v1461 = vadd.f32 %v1401, %v1460
        %v1462 = vpop.f32.mrf.mxu0
        %v1463 = vadd.f32 %v1401, %v1462
        %1464 = vmatmul.bf16.gmra.mxu0 %v1380
        %v1465 = vpop.f32.mrf.mxu0
        %v1466 = vadd.f32 %v1401, %v1465
        %v1467 = vpop.f32.mrf.mxu0
        %v1468 = vadd.f32 %v1401, %v1467
        %1469 = vmatmul.bf16.gmra.mxu0 %v1381
        %v1470 = vpop.f32.mrf.mxu0
        %v1471 = vadd.f32 %v1401, %v1470
        %v1472 = vpop.f32.mrf.mxu0
        %v1473 = vadd.f32 %v1401, %v1472
        %1474 = vmatmul.bf16.gmra.mxu0 %v1382
        %v1475 = vpop.f32.mrf.mxu0
        %v1476 = vadd.f32 %v1401, %v1475
        %v1477 = vpop.f32.mrf.mxu0
        %v1478 = vadd.f32 %v1401, %v1477
        %1479 = vdwg.mxu0
        %1480 = vmax.xlane.f32.xlu0 %v1461
        %v1481 = vpop.xlane.xlu0 %1480
        %1482 = vmax.xlane.f32.xlu0 %v1463
        %v1483 = vpop.xlane.xlu0 %1482
        %1484 = vmax.xlane.f32.xlu0 %v1466
        %v1485 = vpop.xlane.xlu0 %1484
        %1486 = vmax.xlane.f32.xlu0 %v1468
        %v1487 = vpop.xlane.xlu0 %1486
        %1488 = vmax.xlane.f32.xlu0 %v1471
        %v1489 = vpop.xlane.xlu0 %1488
        %1490 = vmax.xlane.f32.xlu0 %v1473
        %v1491 = vpop.xlane.xlu0 %1490
        %1492 = vmax.xlane.f32.xlu0 %v1476
        %v1493 = vpop.xlane.xlu0 %1492
        %1494 = vmax.xlane.f32.xlu0 %v1478
        %v1495 = vpop.xlane.xlu0 %1494
        %v1496 = vsub.f32 %v1461, %v1481
        %v1497 = vsub.f32 %v1463, %v1483
        %v1498 = vsub.f32 %v1466, %v1485
        %v1499 = vsub.f32 %v1468, %v1487
        %v1500 = vsub.f32 %v1471, %v1489
        %v1501 = vsub.f32 %v1473, %v1491
        %v1502 = vsub.f32 %v1476, %v1493
        %v1503 = vsub.f32 %v1478, %v1495
        %v1504 = vmul.f32 %v1496, 1.442695
        %v1505 = vpow.pop %v1504
        %v1506 = vmul.f32 %v1497, 1.442695
        %v1507 = vpow.pop %v1506
        %v1508 = vmul.f32 %v1498, 1.442695
        %v1509 = vpow.pop %v1508
        %v1510 = vmul.f32 %v1499, 1.442695
        %v1511 = vpow.pop %v1510
        %v1512 = vmul.f32 %v1500, 1.442695
        %v1513 = vpow.pop %v1512
        %v1514 = vmul.f32 %v1501, 1.442695
        %v1515 = vpow.pop %v1514
        %v1516 = vmul.f32 %v1502, 1.442695
        %v1517 = vpow.pop %v1516
        %v1518 = vmul.f32 %v1503, 1.442695
        %v1519 = vpow.pop %v1518
        %1520 = vadd.xlane.f32.xlu0 %v1505
        %v1521 = vpop.xlane.xlu0 %1520
        %1522 = vadd.xlane.f32.xlu0 %v1507
        %v1523 = vpop.xlane.xlu0 %1522
        %1524 = vadd.xlane.f32.xlu0 %v1509
        %v1525 = vpop.xlane.xlu0 %1524
        %1526 = vadd.xlane.f32.xlu0 %v1511
        %v1527 = vpop.xlane.xlu0 %1526
        %1528 = vadd.xlane.f32.xlu0 %v1513
        %v1529 = vpop.xlane.xlu0 %1528
        %1530 = vadd.xlane.f32.xlu0 %v1515
        %v1531 = vpop.xlane.xlu0 %1530
        %1532 = vadd.xlane.f32.xlu0 %v1517
        %v1533 = vpop.xlane.xlu0 %1532
        %1534 = vadd.xlane.f32.xlu0 %v1519
        %v1535 = vpop.xlane.xlu0 %1534
        %v1536 = vrcp.pop %v1521
        %v1537 = vrcp.pop %v1523
        %v1538 = vrcp.pop %v1525
        %v1539 = vrcp.pop %v1527
        %v1540 = vrcp.pop %v1529
        %v1541 = vrcp.pop %v1531
        %v1542 = vrcp.pop %v1533
        %v1543 = vrcp.pop %v1535
        %v1544 = vmul.f32 %v1505, %v1536
        %v1545 = vmul.f32 %v1507, %v1537
        %v1546 = vmul.f32 %v1509, %v1538
        %v1547 = vmul.f32 %v1511, %v1539
        %v1548 = vmul.f32 %v1513, %v1540
        %v1549 = vmul.f32 %v1515, %v1541
        %v1550 = vmul.f32 %v1517, %v1542
        %v1551 = vmul.f32 %v1519, %v1543
        %v1552 = vld [vmem:[#allocation8 + $0x4] sm:$0xf]
        %v1553 = vld [vmem:[#allocation8 + $0xc] sm:$0xf]
        %v1554 = vld [vmem:[#allocation8 + $0x14] sm:$0xf]
        %v1555 = vld [vmem:[#allocation8 + $0x1c] sm:$0xf]
        %v1556 = vld [vmem:[#allocation8 + $0x24] sm:$0xf]
        %v1557 = vld [vmem:[#allocation8 + $0x2c] sm:$0xf]
        %v1558 = vld [vmem:[#allocation8 + $0x34] sm:$0xf]
        %v1559 = vld [vmem:[#allocation8 + $0x3c] sm:$0xf]
        %v1560 = vld [vmem:[#allocation8 + $0x44] sm:$0xf]
        %v1561 = vld [vmem:[#allocation8 + $0x4c] sm:$0xf]
        %v1562 = vld [vmem:[#allocation8 + $0x54] sm:$0xf]
        %v1563 = vld [vmem:[#allocation8 + $0x5c] sm:$0xf]
        %v1564 = vld [vmem:[#allocation8 + $0x64] sm:$0xf]
        %v1565 = vld [vmem:[#allocation8 + $0x6c] sm:$0xf]
        %v1566 = vld [vmem:[#allocation8 + $0x74] sm:$0xf]
        %v1567 = vld [vmem:[#allocation8 + $0x7c] sm:$0xf]
        %v1568 = vld [vmem:[%s4 + $0x1] sm:$0x1]
        %v1570 = vperm.slane %v1568, 0
        %v1588 = vunpack.c.l.b16 %v1552
        %v1589 = vunpack.c.l.b16 %v1553
        %v1590 = vunpack.c.l.b16 %v1554
        %v1591 = vunpack.c.l.b16 %v1555
        %v1592 = vunpack.c.l.b16 %v1556
        %v1593 = vunpack.c.l.b16 %v1557
        %v1594 = vunpack.c.l.b16 %v1558
        %v1595 = vunpack.c.l.b16 %v1559
        %v1596 = vunpack.c.l.b16 %v1560
        %v1597 = vunpack.c.l.b16 %v1561
        %v1598 = vunpack.c.l.b16 %v1562
        %v1599 = vunpack.c.l.b16 %v1563
        %v1600 = vunpack.c.l.b16 %v1564
        %v1601 = vunpack.c.l.b16 %v1565
        %v1602 = vunpack.c.l.b16 %v1566
        %v1603 = vunpack.c.l.b16 %v1567
        %v1604 = vpack.c.b16 %v1589, %v1588
        %v1605 = vpack.c.b16 %v1591, %v1590
        %v1606 = vpack.c.b16 %v1593, %v1592
        %v1607 = vpack.c.b16 %v1595, %v1594
        %v1608 = vpack.c.b16 %v1597, %v1596
        %v1609 = vpack.c.b16 %v1599, %v1598
        %v1610 = vpack.c.b16 %v1601, %v1600
        %v1611 = vpack.c.b16 %v1603, %v1602
        %1620 = vmatpush.bf16.msra.mxu0 %v1611
        %1621 = vmatpush.bf16.msra.mxu0 %v1610
        %1622 = vmatpush.bf16.msra.mxu0 %v1609
        %1623 = vmatpush.bf16.msra.mxu0 %v1608
        %1624 = vmatpush.bf16.msra.mxu0 %v1607
        %1625 = vmatpush.bf16.msra.mxu0 %v1606
        %1626 = vmatpush.bf16.msra.mxu0 %v1605
        %1627 = vmatpush.bf16.msra.mxu0 %v1604
        %1628 = vmatmul.bf16.gmra.mxu0 %v524
        %v1629 = vpop.f32.mrf.mxu0
        %v1630 = vadd.f32 %v1570, %v1629
        %v1631 = vpop.f32.mrf.mxu0
        %v1632 = vadd.f32 %v1570, %v1631
        %1633 = vmatmul.bf16.gmra.mxu0 %v525
        %v1634 = vpop.f32.mrf.mxu0
        %v1635 = vadd.f32 %v1570, %v1634
        %v1636 = vpop.f32.mrf.mxu0
        %v1637 = vadd.f32 %v1570, %v1636
        %1638 = vmatmul.bf16.gmra.mxu0 %v526
        %v1639 = vpop.f32.mrf.mxu0
        %v1640 = vadd.f32 %v1570, %v1639
        %v1641 = vpop.f32.mrf.mxu0
        %v1642 = vadd.f32 %v1570, %v1641
        %1643 = vmatmul.bf16.gmra.mxu0 %v527
        %v1644 = vpop.f32.mrf.mxu0
        %v1645 = vadd.f32 %v1570, %v1644
        %v1646 = vpop.f32.mrf.mxu0
        %v1647 = vadd.f32 %v1570, %v1646
        %1648 = vdwg.mxu0
        %v1649 = vtanh.pop %v1630
        %v1650 = vtanh.pop %v1632
        %v1651 = vtanh.pop %v1635
        %v1652 = vtanh.pop %v1637
        %v1653 = vtanh.pop %v1640
        %v1654 = vtanh.pop %v1642
        %v1655 = vtanh.pop %v1645
        %v1656 = vtanh.pop %v1647
        %v1657 = vpack.c.bf16 %v1650, %v1649
        %v1658 = vpack.c.bf16 %v1652, %v1651
        %v1659 = vpack.c.bf16 %v1654, %v1653
        %v1660 = vpack.c.bf16 %v1656, %v1655
        %v1661 = vld [vmem:[#allocation10 + $0x4] sm:$0xf]
        %v1662 = vld [vmem:[#allocation10 + $0xc] sm:$0xf]
        %v1663 = vld [vmem:[#allocation10 + $0x14] sm:$0xf]
        %v1664 = vld [vmem:[#allocation10 + $0x1c] sm:$0xf]
        %v1665 = vld [vmem:[#allocation10 + $0x24] sm:$0xf]
        %v1666 = vld [vmem:[#allocation10 + $0x2c] sm:$0xf]
        %v1667 = vld [vmem:[#allocation10 + $0x34] sm:$0xf]
        %v1668 = vld [vmem:[#allocation10 + $0x3c] sm:$0xf]
        %v1669 = vld [vmem:[#allocation10 + $0x44] sm:$0xf]
        %v1670 = vld [vmem:[#allocation10 + $0x4c] sm:$0xf]
        %v1671 = vld [vmem:[#allocation10 + $0x54] sm:$0xf]
        %v1672 = vld [vmem:[#allocation10 + $0x5c] sm:$0xf]
        %v1673 = vld [vmem:[#allocation10 + $0x64] sm:$0xf]
        %v1674 = vld [vmem:[#allocation10 + $0x6c] sm:$0xf]
        %v1675 = vld [vmem:[#allocation10 + $0x74] sm:$0xf]
        %v1676 = vld [vmem:[#allocation10 + $0x7c] sm:$0xf]
        %v1677 = vld [vmem:[%s6 + $0x1] sm:$0x1]
        %v1679 = vperm.slane %v1677, 0
        %v1697 = vunpack.c.l.b16 %v1661
        %v1698 = vunpack.c.l.b16 %v1662
        %v1699 = vunpack.c.l.b16 %v1663
        %v1700 = vunpack.c.l.b16 %v1664
        %v1701 = vunpack.c.l.b16 %v1665
        %v1702 = vunpack.c.l.b16 %v1666
        %v1703 = vunpack.c.l.b16 %v1667
        %v1704 = vunpack.c.l.b16 %v1668
        %v1705 = vunpack.c.l.b16 %v1669
        %v1706 = vunpack.c.l.b16 %v1670
        %v1707 = vunpack.c.l.b16 %v1671
        %v1708 = vunpack.c.l.b16 %v1672
        %v1709 = vunpack.c.l.b16 %v1673
        %v1710 = vunpack.c.l.b16 %v1674
        %v1711 = vunpack.c.l.b16 %v1675
        %v1712 = vunpack.c.l.b16 %v1676
        %v1713 = vpack.c.b16 %v1698, %v1697
        %v1714 = vpack.c.b16 %v1700, %v1699
        %v1715 = vpack.c.b16 %v1702, %v1701
        %v1716 = vpack.c.b16 %v1704, %v1703
        %v1717 = vpack.c.b16 %v1706, %v1705
        %v1718 = vpack.c.b16 %v1708, %v1707
        %v1719 = vpack.c.b16 %v1710, %v1709
        %v1720 = vpack.c.b16 %v1712, %v1711
        %1729 = vmatpush.bf16.msra.mxu0 %v1720
        %1730 = vmatpush.bf16.msra.mxu0 %v1719
        %1731 = vmatpush.bf16.msra.mxu0 %v1718
        %1732 = vmatpush.bf16.msra.mxu0 %v1717
        %1733 = vmatpush.bf16.msra.mxu0 %v1716
        %1734 = vmatpush.bf16.msra.mxu0 %v1715
        %1735 = vmatpush.bf16.msra.mxu0 %v1714
        %1736 = vmatpush.bf16.msra.mxu0 %v1713
        %1737 = vmatmul.bf16.gmra.mxu0 %v1657
        %v1738 = vpop.f32.mrf.mxu0
        %v1739 = vadd.f32 %v1679, %v1738
        %v1740 = vpop.f32.mrf.mxu0
        %v1741 = vadd.f32 %v1679, %v1740
        %1742 = vmatmul.bf16.gmra.mxu0 %v1658
        %v1743 = vpop.f32.mrf.mxu0
        %v1744 = vadd.f32 %v1679, %v1743
        %v1745 = vpop.f32.mrf.mxu0
        %v1746 = vadd.f32 %v1679, %v1745
        %1747 = vmatmul.bf16.gmra.mxu0 %v1659
        %v1748 = vpop.f32.mrf.mxu0
        %v1749 = vadd.f32 %v1679, %v1748
        %v1750 = vpop.f32.mrf.mxu0
        %v1751 = vadd.f32 %v1679, %v1750
        %1752 = vmatmul.bf16.gmra.mxu0 %v1660
        %v1753 = vpop.f32.mrf.mxu0
        %v1754 = vadd.f32 %v1679, %v1753
        %v1755 = vpop.f32.mrf.mxu0
        %v1756 = vadd.f32 %v1679, %v1755
        %1757 = vdwg.mxu0
        %v1758 = vtanh.pop %v1739
        %v1759 = vtanh.pop %v1741
        %v1760 = vtanh.pop %v1744
        %v1761 = vtanh.pop %v1746
        %v1762 = vtanh.pop %v1749
        %v1763 = vtanh.pop %v1751
        %v1764 = vtanh.pop %v1754
        %v1765 = vtanh.pop %v1756
        %v1766 = vpack.c.bf16 %v1759, %v1758
        %v1767 = vpack.c.bf16 %v1761, %v1760
        %v1768 = vpack.c.bf16 %v1763, %v1762
        %v1769 = vpack.c.bf16 %v1765, %v1764
        %v1770 = vld [vmem:[#allocation11 + $0x4] sm:$0xf]
        %v1771 = vld [vmem:[#allocation11 + $0xc] sm:$0xf]
        %v1772 = vld [vmem:[#allocation11 + $0x14] sm:$0xf]
        %v1773 = vld [vmem:[#allocation11 + $0x1c] sm:$0xf]
        %v1774 = vld [vmem:[#allocation11 + $0x24] sm:$0xf]
        %v1775 = vld [vmem:[#allocation11 + $0x2c] sm:$0xf]
        %v1776 = vld [vmem:[#allocation11 + $0x34] sm:$0xf]
        %v1777 = vld [vmem:[#allocation11 + $0x3c] sm:$0xf]
        %v1778 = vld [vmem:[#allocation11 + $0x44] sm:$0xf]
        %v1779 = vld [vmem:[#allocation11 + $0x4c] sm:$0xf]
        %v1780 = vld [vmem:[#allocation11 + $0x54] sm:$0xf]
        %v1781 = vld [vmem:[#allocation11 + $0x5c] sm:$0xf]
        %v1782 = vld [vmem:[#allocation11 + $0x64] sm:$0xf]
        %v1783 = vld [vmem:[#allocation11 + $0x6c] sm:$0xf]
        %v1784 = vld [vmem:[#allocation11 + $0x74] sm:$0xf]
        %v1785 = vld [vmem:[#allocation11 + $0x7c] sm:$0xf]
        %v1786 = vld [vmem:[%s8 + $0x1] sm:$0x1]
        %v1788 = vperm.slane %v1786, 0
        %v1806 = vunpack.c.l.b16 %v1770
        %v1807 = vunpack.c.l.b16 %v1771
        %v1808 = vunpack.c.l.b16 %v1772
        %v1809 = vunpack.c.l.b16 %v1773
        %v1810 = vunpack.c.l.b16 %v1774
        %v1811 = vunpack.c.l.b16 %v1775
        %v1812 = vunpack.c.l.b16 %v1776
        %v1813 = vunpack.c.l.b16 %v1777
        %v1814 = vunpack.c.l.b16 %v1778
        %v1815 = vunpack.c.l.b16 %v1779
        %v1816 = vunpack.c.l.b16 %v1780
        %v1817 = vunpack.c.l.b16 %v1781
        %v1818 = vunpack.c.l.b16 %v1782
        %v1819 = vunpack.c.l.b16 %v1783
        %v1820 = vunpack.c.l.b16 %v1784
        %v1821 = vunpack.c.l.b16 %v1785
        %v1822 = vpack.c.b16 %v1807, %v1806
        %v1823 = vpack.c.b16 %v1809, %v1808
        %v1824 = vpack.c.b16 %v1811, %v1810
        %v1825 = vpack.c.b16 %v1813, %v1812
        %v1826 = vpack.c.b16 %v1815, %v1814
        %v1827 = vpack.c.b16 %v1817, %v1816
        %v1828 = vpack.c.b16 %v1819, %v1818
        %v1829 = vpack.c.b16 %v1821, %v1820
        %1838 = vmatpush.bf16.msra.mxu0 %v1829
        %1839 = vmatpush.bf16.msra.mxu0 %v1828
        %1840 = vmatpush.bf16.msra.mxu0 %v1827
        %1841 = vmatpush.bf16.msra.mxu0 %v1826
        %1842 = vmatpush.bf16.msra.mxu0 %v1825
        %1843 = vmatpush.bf16.msra.mxu0 %v1824
        %1844 = vmatpush.bf16.msra.mxu0 %v1823
        %1845 = vmatpush.bf16.msra.mxu0 %v1822
        %1846 = vmatmul.bf16.gmra.mxu0 %v1766
        %v1847 = vpop.f32.mrf.mxu0
        %v1848 = vadd.f32 %v1788, %v1847
        %v1849 = vpop.f32.mrf.mxu0
        %v1850 = vadd.f32 %v1788, %v1849
        %1851 = vmatmul.bf16.gmra.mxu0 %v1767
        %v1852 = vpop.f32.mrf.mxu0
        %v1853 = vadd.f32 %v1788, %v1852
        %v1854 = vpop.f32.mrf.mxu0
        %v1855 = vadd.f32 %v1788, %v1854
        %1856 = vmatmul.bf16.gmra.mxu0 %v1768
        %v1857 = vpop.f32.mrf.mxu0
        %v1858 = vadd.f32 %v1788, %v1857
        %v1859 = vpop.f32.mrf.mxu0
        %v1860 = vadd.f32 %v1788, %v1859
        %1861 = vmatmul.bf16.gmra.mxu0 %v1769
        %v1862 = vpop.f32.mrf.mxu0
        %v1863 = vadd.f32 %v1788, %v1862
        %v1864 = vpop.f32.mrf.mxu0
        %v1865 = vadd.f32 %v1788, %v1864
        %1866 = vdwg.mxu0
        %1867 = vst [vmem:[%s491] sm:$0xff] %v1544
        %1868 = vst [vmem:[%s491 + $0x8] sm:$0xff] %v1545
        %1869 = vst [vmem:[%s491 + $0x10] sm:$0xff] %v1546
        %1870 = vst [vmem:[%s491 + $0x18] sm:$0xff] %v1547
        %1871 = vst [vmem:[%s491 + $0x20] sm:$0xff] %v1548
        %1872 = vst [vmem:[%s491 + $0x28] sm:$0xff] %v1549
        %1873 = vst [vmem:[%s491 + $0x30] sm:$0xff] %v1550
        %1874 = vst [vmem:[%s491 + $0x38] sm:$0xff] %v1551
        %1875 = vst [vmem:[%s498] sm:$0xff] %v1848
        %1876 = vst [vmem:[%s498 + $0x8] sm:$0xff] %v1850
        %1877 = vst [vmem:[%s498 + $0x10] sm:$0xff] %v1853
        %1878 = vst [vmem:[%s498 + $0x18] sm:$0xff] %v1855
        %1879 = vst [vmem:[%s498 + $0x20] sm:$0xff] %v1858
        %1880 = vst [vmem:[%s498 + $0x28] sm:$0xff] %v1860
        %1881 = vst [vmem:[%s498 + $0x30] sm:$0xff] %v1863
        %1882 = vst [vmem:[%s498 + $0x38] sm:$0xff] %v1865
        %1883 = vst.msk [vmem:[%s513] sm:$0xff] %vm903, %v984
        %1884 = vst.msk [vmem:[%s513 + $0x8] sm:$0xff] %vm903, %v985
        %1885 = vst.msk [vmem:[%s513 + $0x10] sm:$0xff] %vm903, %v986
        %1886 = vst.msk [vmem:[%s513 + $0x18] sm:$0xff] %vm903, %v987
        %1887 = vst.msk [vmem:[%s513 + $0x20] sm:$0xff] %vm903, %v988
        %1888 = vst.msk [vmem:[%s513 + $0x28] sm:$0xff] %vm903, %v989
        %1889 = vst.msk [vmem:[%s513 + $0x30] sm:$0xff] %vm903, %v990
        %1890 = vst.msk [vmem:[%s513 + $0x38] sm:$0xff] %vm903, %v991
        %s1891 = sand.u32 %s237, 1
        %s1892 = scalar_lea.sflag [#allocation4], %s1891
        %s1893 = sand.u32 %s237, 1
        %s1894 = smul.addr %s1893, 64
        %s1895 = scalar_lea.vmem [#allocation13], %s1894
        %s1896 = sand.u32 %s263, 1
        %s1897 = scalar_lea.sflag [#allocation15], %s1896
        %s1898 = sand.u32 %s263, 1
        %s1899 = smul.addr %s1898, 64
        %s1900 = scalar_lea.vmem [#allocation14], %s1899
        %s1901 = smul.u32 8, %s35
        %p1902 = scmp.lt.s32.totalorder %s1901, 15
        %s1903 = scalar_select %p1902, %s1901, 15
        %s1904 = smul.addr %s1903, 8
        %s1905 = scalar_lea.vmem %s11, %s1904
        // Predicated region
        $region81: #{tpu_custom_call.1} parent=55 // pred_check
          %p1906 = pneg %p247
        $region82: #{tpu_custom_call.1} parent=55 // pred_check_branch
          %1908 = sbr.rel (%p1906) target = $region84
        $region83: #{tpu_custom_call.1} parent=55 // pred_region
          %s1909 = smul.u32 8, %s35
          %1911 = vsyncadd %s1892, 0
          %s1912 = smul.addr %s1909, 8
          %s1913 = scalar_lea.hbm %s9, %s1912
          %s1914 = sshll.u32 %s1895, 4
          %s1915 = int_to_ptr.vmem [resolvable:$true] %s1914
          %s1916 = sshll.u32 %s1913, 4
          %s1917 = int_to_ptr.hbm [resolvable:$true] %s1916
          %1922 = dma.vmem_to_hbm [thread:$0]  %s1915, 1024, %s1917, %s1892, 128, 128, 8
        $region84: #{tpu_custom_call.1} parent=55 // pred_fallthru
          _
        // Predicated region
        $region85: #{tpu_custom_call.1} parent=55 // pred_check
          %p1923 = pneg %p273
        $region86: #{tpu_custom_call.1} parent=55 // pred_check_branch
          %1925 = sbr.rel (%p1923) target = $region88
        $region87: #{tpu_custom_call.1} parent=55 // pred_region
          %s1926 = smul.u32 8, %s35
          %1928 = vsyncadd %s1897, 0
          %s1929 = smul.addr %s1926, 8
          %s1930 = scalar_lea.hbm %s10, %s1929
          %s1931 = sshll.u32 %s1900, 4
          %s1932 = int_to_ptr.vmem [resolvable:$true] %s1931
          %s1933 = sshll.u32 %s1930, 4
          %s1934 = int_to_ptr.hbm [resolvable:$true] %s1933
          %1939 = dma.vmem_to_hbm [thread:$0]  %s1932, 1024, %s1934, %s1897, 128, 128, 8
        $region88: #{tpu_custom_call.1} parent=55 // pred_fallthru
          _
        // Predicated region
        $region89: #{tpu_custom_call.1} parent=55 // pred_check
          %p1940 = pneg %p299
        $region90: #{tpu_custom_call.1} parent=55 // pred_check_branch
          %1942 = sbr.rel (%p1940) target = $region92
        $region91: #{tpu_custom_call.1} parent=55 // pred_region
          %s1943 = smul.u32 8, %s35
        $region92: #{tpu_custom_call.1} parent=55 // pred_fallthru
          _
      $region56: #{tpu_custom_call.1} parent=5 // pred_fallthru
        _
      %p1944 = scmp.le.s32.totalorder 2, %s30
      // Predicated region
      $region93: #{tpu_custom_call.1} parent=5 // pred_check
        %p1945 = pneg %p1944
      $region94: #{tpu_custom_call.1} parent=5 // pred_check_branch
        %1947 = sbr.rel (%p1945) target = $region96
      $region95: #{tpu_custom_call.1} parent=5 // pred_region
        %s1948 = ssub.s32 %s30, 2
        // Predicated region
        $region97: #{tpu_custom_call.1} parent=95 // pred_check
          %p1949 = pneg %p253
        $region98: #{tpu_custom_call.1} parent=95 // pred_check_branch
          %1951 = sbr.rel (%p1949) target = $region100
        $region99: #{tpu_custom_call.1} parent=95 // pred_region
          %s1952 = sand.u32 %s238, 1
          %s1953 = scalar_lea.sflag [#allocation4], %s1952
          %s1954 = sand.u32 %s238, 1
          %s1955 = smul.addr %s1954, 64
          %s1956 = scalar_lea.vmem [#allocation13], %s1955
          %1958 = dma.done %s1953, 1024
        $region100: #{tpu_custom_call.1} parent=95 // pred_fallthru
          _
        // Predicated region
        $region101: #{tpu_custom_call.1} parent=95 // pred_check
          %p1959 = pneg %p279
        $region102: #{tpu_custom_call.1} parent=95 // pred_check_branch
          %1961 = sbr.rel (%p1959) target = $region104
        $region103: #{tpu_custom_call.1} parent=95 // pred_region
          %s1962 = sand.u32 %s264, 1
          %s1963 = scalar_lea.sflag [#allocation15], %s1962
          %s1964 = sand.u32 %s264, 1
          %s1965 = smul.addr %s1964, 64
          %s1966 = scalar_lea.vmem [#allocation14], %s1965
          %1968 = dma.done %s1963, 1024
        $region104: #{tpu_custom_call.1} parent=95 // pred_fallthru
          _
        // Predicated region
        $region105: #{tpu_custom_call.1} parent=95 // pred_check
          %p1969 = pneg %p305
        $region106: #{tpu_custom_call.1} parent=95 // pred_check_branch
          %1971 = sbr.rel (%p1969) target = $region108
        $region107: #{tpu_custom_call.1} parent=95 // pred_region
          %s1972 = smul.u32 8, %s36
          %p1973 = scmp.lt.s32.totalorder %s1972, 15
          %s1974 = scalar_select %p1973, %s1972, 15
          %s1975 = smul.addr %s1974, 8
          %s1976 = scalar_lea.vmem %s11, %s1975
        $region108: #{tpu_custom_call.1} parent=95 // pred_fallthru
          _
      $region96: #{tpu_custom_call.1} parent=5 // pred_fallthru
        _
    $region6: #{tpu_custom_call.1} parent=1 // loop_footer
      %s34 = sadd.s32 1, %s30
    $region7: #{tpu_custom_call.1} parent=1 // loop_footer_branch
      %29 = sbr.rel target = $region3
    $region8: #{tpu_custom_call.1} parent=1 // loop_exit
      _
    %1977 = vsyncpa [#allocation3], 1
    %s1978 = scalar_lea.sflag [#allocation3], 1
    %1979 = vsyncpa %s1978, 1
    %1980 = vsyncpa [#allocation6], 1
    %1981 = vsyncpa [#allocation9], 1
    %1982 = vsyncpa [#allocation12], 1
    %1983 = vsyncpa [#allocation4], 1
    %s1984 = scalar_lea.sflag [#allocation4], 1
    %1985 = vsyncpa %s1984, 1
    %1986 = vsyncpa [#allocation15], 1
    %s1987 = scalar_lea.sflag [#allocation15], 1
    %1988 = vsyncpa %s1987, 1

</llo_original>
